<compile_context>
chip_gen: v5e
topology: v5e:2x2
jax: 0.10.0
libtpu: 0.0.40
codegen_flags: <defaults>
</compile_context>

<pallas_src>
import jax
import jax.numpy as jnp
from jax.experimental import pallas as pl
from jax.experimental.pallas import tpu as pltpu


def _round_up(x, m):
    return (x + m - 1) // m * m


def _sigmoid(x):
    # Exact: sigmoid(x) == 0.5 * tanh(0.5 * x) + 0.5.
    # One EUP transcendental + cheap VALU scale/add instead of exp + reciprocal,
    # reducing pressure on the single EUP slot on the serial critical path.
    return 0.5 * jnp.tanh(0.5 * x) + 0.5


def _lstm_kernel(lens_ref, bias_ref, gx_ref, whh_ref,
                 out_ref, hn_ref, cn_ref,
                 h_sc, c_sc):
    """Grid = (num_batch_tiles, num_time_blocks); one grid step = TT LSTM steps
    for one batch tile.

    lens_ref : (TB, 1)         int32  sequence lengths (per batch tile)
    bias_ref : (1, 4*Hp)       f32    combined b_ih + b_hh (resident)
    gx_ref   : (TT, TB, 4*Hp)  bf16   precomputed x @ W_ih^T (time-major)
    whh_ref  : (Hp, 4*Hp)      bf16   hidden-to-hidden weights (transposed, gate-padded)
    out_ref  : (TB, TT*Hp)     f32    batch-major per-step hidden outputs slab
    hn_ref   : (TB, Hp)        f32    final hidden state (written on last time block)
    cn_ref   : (TB, Hp)        f32    final cell state
    h_sc,c_sc: (TB, Hp)        f32    recurrent state carried across time blocks
    """
    nt = pl.program_id(1)
    TT = gx_ref.shape[0]
    Hp = hn_ref.shape[1]

    @pl.when(nt == 0)
    def _():
        h_sc[...] = jnp.zeros_like(h_sc)
        c_sc[...] = jnp.zeros_like(c_sc)

    # Invariants hoisted out of the unrolled step body.
    lens = lens_ref[...]            # (TB, 1) int32
    bias = bias_ref[...]            # (1, 4*Hp) f32
    whh = whh_ref[...]              # (Hp, 4*Hp) bf16
    t0 = nt * TT

    # Static Python unroll over the time block; state carried in-place through
    # VMEM scratch (bounds the live ranges of the big (TB, Hp) carries).
    for s in range(TT):
        h_prev = h_sc[...]
        c_prev = c_sc[...]

        # Serial critical path: one (TB, Hp) x (Hp, 4*Hp) bf16 matmul, f32 accum.
        # bf16 gx is upcast and the bias added in f32 here.
        gates = (jnp.dot(h_prev.astype(whh.dtype), whh,
                         preferred_element_type=jnp.float32)
                 + gx_ref[s].astype(jnp.float32) + bias)

        # Hp is a multiple of 128, so every gate slice is whole lane tiles.
        i_g = _sigmoid(gates[:, 0 * Hp:1 * Hp])
        f_g = _sigmoid(gates[:, 1 * Hp:2 * Hp])
        g_g = jnp.tanh(gates[:, 2 * Hp:3 * Hp])
        o_g = _sigmoid(gates[:, 3 * Hp:4 * Hp])
        c_new = f_g * c_prev + i_g * g_g
        h_new = o_g * jnp.tanh(c_new)

        # valid[b] = (t < seq_lens[b]); freeze state / zero output past seq end.
        valid = (t0 + s) < lens                       # (TB, 1) bool
        h_sc[...] = jnp.where(valid, h_new, h_prev)
        c_sc[...] = jnp.where(valid, c_new, c_prev)

        # Output block is (TB, TT*Hp) == batch-major (B, T, H) flattened, so this
        # store is a static, 128-aligned, lane-dense slice (no masked vst), and
        # no wrapper-side transpose over the outputs is needed afterwards.
        out_ref[:, s * Hp:(s + 1) * Hp] = jnp.where(valid, h_new, 0.0).astype(out_ref.dtype)

    @pl.when(nt == pl.num_programs(1) - 1)
    def _():
        hn_ref[...] = h_sc[...].astype(hn_ref.dtype)
        cn_ref[...] = c_sc[...].astype(cn_ref.dtype)


def dynamic_rnn(seq_input, seq_lens, w_ih, w_hh, b_ih, b_hh, *,
                time_block=None, batch_tile=None, vmem_budget_bytes=None):
    """Pallas implementation of DynamicRNN.forward for a 1-layer LSTM.

    seq_input : (B, T, E) float32   padded input sequences (batch-first)
    seq_lens  : (B,)      int32     valid lengths (>= 1, as in PyTorch)
    w_ih      : (4H, E), w_hh: (4H, H), b_ih/b_hh: (4H,)   PyTorch LSTM params
                (gate order [i, f, g, o])

    Returns (outputs (B, T, H), (h_n (B, H), c_n (B, H))).
    """
    # TODO(synk): initial_state (h0, c0) and multi-layer / bidirectional
    # rnn_model variants are not supported; this is the default zero-init,
    # single-layer unidirectional path.
    B, T, E = seq_input.shape
    H = w_hh.shape[1]
    assert w_ih.shape == (4 * H, E) and w_hh.shape == (4 * H, H)

    f32, bf16 = jnp.float32, jnp.bfloat16

    # ---- tiling parameters ------------------------------------------------
    Hp = _round_up(H, 128)                     # lane-pad hidden dim
    Bp = _round_up(B, 8)                       # sublane-pad batch
    if batch_tile is not None:
        TB = _round_up(min(int(batch_tile), Bp), 8)
    else:
        # TODO(synk): on v7x, when 16 <= Bp <= 128, splitting TB so NB >= 2 would
        # let the "parallel" axis use both TensorCores.
        TB = min(Bp, 128)
    Bp = _round_up(Bp, TB)

    # Per-generation VMEM budget (v5e/v6e: 128 MiB physical, v7x: 64 MiB).
    if vmem_budget_bytes is None:
        cap = None
        try:
            cap = getattr(pltpu.get_tpu_info(), "vmem_capacity_bytes", None)
        except Exception:
            cap = None
        if not cap:
            cap = 64 * 1024 * 1024             # conservative (v7x-sized) fallback
        vmem_budget_bytes = (3 * int(cap)) // 4  # leave compiler headroom
    vmem_budget_bytes = int(vmem_budget_bytes)

    # Bytes that scale with TT: double-buffered bf16 gx block + f32 out block.
    per_tt = TB * Hp * (2 * 4 * 2 + 2 * 4)     # = 24 * TB * Hp
    # TT-independent residents: double-buffered bf16 W_hh, f32 h/c scratch,
    # bias / lens blocks, plus slack for compiler-internal scratch.
    fixed = (2 * Hp * 4 * Hp * 2 + 2 * TB * Hp * 4
             + 2 * 8 * 4 * Hp * 4 + 2 * TB * 128 * 4 + (2 << 20))
    if time_block is None:
        TT = (vmem_budget_bytes - fixed) // per_tt
    else:
        TT = int(time_block)
    TT = int(max(1, min(TT, 32, T)))           # cap unroll / trace size
    Tp = _round_up(T, TT)
    NB, NT = Bp // TB, Tp // TT
    vmem_limit = int(max(vmem_budget_bytes, fixed + per_tt * TT))

    # ---- parameter prep (host/XLA side) ------------------------------------
    wih_g = jnp.asarray(w_ih, f32).reshape(4, H, E)
    whh_g = jnp.asarray(w_hh, f32).reshape(4, H, H)
    bias_g = (jnp.asarray(b_ih, f32) + jnp.asarray(b_hh, f32)).reshape(4, H)

    # Gate-padded combined bias, added in f32 inside the kernel. Padded hidden
    # units see zero weights & zero bias -> their state stays exactly 0.
    bias_pad = jnp.zeros((4, Hp), f32).at[:, :H].set(bias_g).reshape(1, 4 * Hp)

    # Recurrent weights: (H_in, 4, H_out), gate-padded so each gate occupies
    # whole 128-lane tiles, bf16 for the MXU.
    whh_pad = jnp.zeros((Hp, 4, Hp), f32).at[:H, :, :H].set(
        jnp.transpose(whh_g, (2, 0, 1))).reshape(Hp, 4 * Hp).astype(bf16)

    # Hoisted input projection: pad inputs/weights FIRST so one big GEMM writes
    # the padded time-major (Tp, Bp, 4*Hp) layout directly (no pad-copy over the
    # largest intermediate); stored in bf16 to halve HBM/VMEM traffic.
    wih_pad = jnp.zeros((4, Hp, E), f32).at[:, :H, :].set(wih_g)
    x_pad = seq_input.astype(f32)
    if (Bp, Tp) != (B, T):
        x_pad = jnp.pad(x_pad, ((0, Bp - B), (0, Tp - T), (0, 0)))
    gx_pad = jnp.einsum('bte,ghe->tbgh', x_pad.astype(bf16), wih_pad.astype(bf16),
                        preferred_element_type=f32)
    gx_pad = gx_pad.reshape(Tp, Bp, 4 * Hp).astype(bf16)

    # Padded batch rows get length 0 -> never valid -> state/outputs stay 0.
    lens_pad = jnp.zeros((Bp, 1), jnp.int32).at[:B, 0].set(
        seq_lens.astype(jnp.int32))

    out_flat, h_n, c_n = pl.pallas_call(
        _lstm_kernel,
        out_shape=(
            jax.ShapeDtypeStruct((Bp, Tp * Hp), f32),   # batch-major (B,T,H) flattened
            jax.ShapeDtypeStruct((Bp, Hp), f32),
            jax.ShapeDtypeStruct((Bp, Hp), f32),
        ),
        grid_spec=pltpu.PrefetchScalarGridSpec(
            num_scalar_prefetch=0,
            grid=(NB, NT),
            in_specs=[
                pl.BlockSpec((TB, 1), lambda nb, nt: (nb, 0)),               # seq_lens
                pl.BlockSpec((1, 4 * Hp), lambda nb, nt: (0, 0)),            # bias (f32, resident)
                pl.BlockSpec((TT, TB, 4 * Hp), lambda nb, nt: (nt, nb, 0)),  # gates_x slab (bf16)
                # TODO(synk): pipeline_mode=pl.Buffered(1) on this invariant operand
                # would reclaim its second VMEM buffer once single-buffering is verified.
                pl.BlockSpec((Hp, 4 * Hp), lambda nb, nt: (0, 0)),           # W_hh^T (bf16, resident)
            ],
            out_specs=[
                pl.BlockSpec((TB, TT * Hp), lambda nb, nt: (nb, nt)),        # outputs slab
                pl.BlockSpec((TB, Hp), lambda nb, nt: (nb, 0)),              # h_n
                pl.BlockSpec((TB, Hp), lambda nb, nt: (nb, 0)),              # c_n
            ],
            scratch_shapes=[
                pltpu.VMEM((TB, Hp), f32),   # h state
                pltpu.VMEM((TB, Hp), f32),   # c state
            ],
        ),
        compiler_params=pltpu.CompilerParams(
            # batch tiles are independent (megacore-parallel); the time axis is
            # the serial recurrence.
            dimension_semantics=("parallel", "arbitrary"),
            vmem_limit_bytes=vmem_limit,
        ),
    )(lens_pad, bias_pad, gx_pad, whh_pad)

    # Reshape is free (row-major); only slicing off padding touches memory.
    outputs = out_flat.reshape(Bp, Tp, Hp)[:B, :T, :H]
    return outputs, (h_n[:B, :H], c_n[:B, :H])


def _reference_dynamic_rnn(seq_input, seq_lens, w_ih, w_hh, b_ih, b_hh):
    """Pure-JAX f32 reference (same masking semantics) for correctness checking."""
    B, T, E = seq_input.shape
    H = w_hh.shape[1]
    wih_t, whh_t = w_ih.T, w_hh.T
    bias = b_ih + b_hh

    def step(carry, xs):
        h, c = carry
        x_t, t = xs
        gates = x_t @ wih_t + h @ whh_t + bias
        i = jax.nn.sigmoid(gates[:, 0 * H:1 * H])
        f = jax.nn.sigmoid(gates[:, 1 * H:2 * H])
        g = jnp.tanh(gates[:, 2 * H:3 * H])
        o = jax.nn.sigmoid(gates[:, 3 * H:4 * H])
        c_new = f * c + i * g
        h_new = o * jnp.tanh(c_new)
        valid = (t < seq_lens)[:, None]
        h = jnp.where(valid, h_new, h)
        c = jnp.where(valid, c_new, c)
        out = jnp.where(valid, h_new, 0.0)
        return (h, c), out

    h0 = jnp.zeros((B, H), jnp.float32)
    c0 = jnp.zeros((B, H), jnp.float32)
    (h_n, c_n), outs = jax.lax.scan(
        step, (h0, c0),
        (jnp.transpose(seq_input, (1, 0, 2)), jnp.arange(T)))
    return jnp.transpose(outs, (1, 0, 2)), (h_n, c_n)


if __name__ == "__main__":
    # Small shapes consistent with the module's forward.
    B, T, E, H = 2, 8, 16, 32

    key = jax.random.PRNGKey(0)
    k_x, k_wih, k_whh, k_bih, k_bhh = jax.random.split(key, 5)

    seq_input = jax.random.normal(k_x, (B, T, E), dtype=jnp.float32)
    seq_lens = jnp.array([8, 5], dtype=jnp.int32)   # variable lengths, max = T

    # Deterministic LSTM parameters (PyTorch-style uniform(-1/sqrt(H), 1/sqrt(H))).
    bound = 1.0 / jnp.sqrt(jnp.float32(H))
    w_ih = jax.random.uniform(k_wih, (4 * H, E), jnp.float32, -bound, bound)
    w_hh = jax.random.uniform(k_whh, (4 * H, H), jnp.float32, -bound, bound)
    b_ih = jax.random.uniform(k_bih, (4 * H,), jnp.float32, -bound, bound)
    b_hh = jax.random.uniform(k_bhh, (4 * H,), jnp.float32, -bound, bound)

    outputs, (h_n, c_n) = dynamic_rnn(seq_input, seq_lens, w_ih, w_hh, b_ih, b_hh)
    jax.block_until_ready((outputs, h_n, c_n))

    # Correctness check against pure-JAX f32 reference. The kernel uses bf16
    # MXU operands and a bf16 precomputed input projection with f32 accumulation
    # and f32 bias/state -> documented precision change, hence loosened tolerance.
    ref_out, (ref_h, ref_c) = _reference_dynamic_rnn(
        seq_input, seq_lens, w_ih, w_hh, b_ih, b_hh)
    assert outputs.shape == (B, T, H) and h_n.shape == (B, H) and c_n.shape == (B, H)
    assert jnp.allclose(outputs, ref_out, atol=3e-2, rtol=3e-2)
    assert jnp.allclose(h_n, ref_h, atol=3e-2, rtol=3e-2)
    assert jnp.allclose(c_n, ref_c, atol=3e-2, rtol=3e-2)

    print("KERNEL_OK")
</pallas_src>

<mosaic_0001>
module attributes {stable_mosaic.version = 11 : i64} {
  func.func @_lstm_kernel(%arg0: i32, %arg1: i32, %arg2: memref<8x1xi32, #tpu.memory_space<vmem>>, %arg3: memref<1x512xf32, #tpu.memory_space<vmem>>, %arg4: memref<8x8x512xbf16, #tpu.memory_space<vmem>>, %arg5: memref<128x512xbf16, #tpu.memory_space<vmem>>, %arg6: memref<8x1024xf32, #tpu.memory_space<vmem>>, %arg7: memref<8x128xf32, #tpu.memory_space<vmem>>, %arg8: memref<8x128xf32, #tpu.memory_space<vmem>>, %arg9: memref<8x128xf32, #tpu.memory_space<vmem>>, %arg10: memref<8x128xf32, #tpu.memory_space<vmem>>) attributes {dimension_semantics = [#tpu.dimension_semantics<parallel>, #tpu.dimension_semantics<arbitrary>], iteration_bounds = array<i64: 1, 1>, scalar_prefetch = 0 : i64, scratch_operands = 2 : i64, tpu.core_type = #tpu.core_type<tc>, window_params = [{transform_indices = @transform_0, window_bounds = array<i64: 8, 1>}, {pipeline_mode = #tpu.pipeline_mode<synchronous>, transform_indices = @transform_1, window_bounds = array<i64: 1, 512>}, {transform_indices = @transform_2, window_bounds = array<i64: 8, 8, 512>}, {pipeline_mode = #tpu.pipeline_mode<synchronous>, transform_indices = @transform_3, window_bounds = array<i64: 128, 512>}, {transform_indices = @transform_4, window_bounds = array<i64: 8, 1024>}, {transform_indices = @transform_5, window_bounds = array<i64: 8, 128>}, {transform_indices = @transform_6, window_bounds = array<i64: 8, 128>}]} {
    %c0_i32 = arith.constant 0 : i32
    %0 = arith.cmpi eq, %arg1, %c0_i32 : i32
    %1 = arith.extui %0 : i1 to i32
    %c0_i32_0 = arith.constant 0 : i32
    %2 = arith.cmpi ne, %1, %c0_i32_0 : i32
    scf.if %2 {
      %cst_186 = arith.constant 0.000000e+00 : f32
      %466 = vector.broadcast %cst_186 : f32 to vector<8x128xf32>
      %c0_187 = arith.constant 0 : index
      %c0_188 = arith.constant 0 : index
      %467 = vector.load %arg9[%c0_187, %c0_188] : memref<8x128xf32, #tpu.memory_space<vmem>>, vector<8x128xf32>
      tpu.vector_store %arg9[%c0_187, %c0_188], %466 {strides = array<i32>} : memref<8x128xf32, #tpu.memory_space<vmem>>, vector<8x128xf32>,
      %cst_189 = arith.constant 0.000000e+00 : f32
      %468 = vector.broadcast %cst_189 : f32 to vector<8x128xf32>
      %c0_190 = arith.constant 0 : index
      %c0_191 = arith.constant 0 : index
      %469 = vector.load %arg10[%c0_190, %c0_191] : memref<8x128xf32, #tpu.memory_space<vmem>>, vector<8x128xf32>
      tpu.vector_store %arg10[%c0_190, %c0_191], %468 {strides = array<i32>} : memref<8x128xf32, #tpu.memory_space<vmem>>, vector<8x128xf32>,
    } else {
    }
    %c0 = arith.constant 0 : index
    %c0_1 = arith.constant 0 : index
    %3 = vector.load %arg2[%c0, %c0_1] : memref<8x1xi32, #tpu.memory_space<vmem>>, vector<8x1xi32>
    %c0_2 = arith.constant 0 : index
    %c0_3 = arith.constant 0 : index
    %4 = vector.load %arg3[%c0_2, %c0_3] : memref<1x512xf32, #tpu.memory_space<vmem>>, vector<1x512xf32>
    %c0_4 = arith.constant 0 : index
    %c0_5 = arith.constant 0 : index
    %5 = vector.load %arg5[%c0_4, %c0_5] : memref<128x512xbf16, #tpu.memory_space<vmem>>, vector<128x512xbf16>
    %c8_i32 = arith.constant 8 : i32
    %6 = arith.muli %arg1, %c8_i32 : i32
    %c0_6 = arith.constant 0 : index
    %c0_7 = arith.constant 0 : index
    %7 = vector.load %arg9[%c0_6, %c0_7] : memref<8x128xf32, #tpu.memory_space<vmem>>, vector<8x128xf32>
    %c0_8 = arith.constant 0 : index
    %c0_9 = arith.constant 0 : index
    %8 = vector.load %arg10[%c0_8, %c0_9] : memref<8x128xf32, #tpu.memory_space<vmem>>, vector<8x128xf32>
    %9 = arith.truncf %7 : vector<8x128xf32> to vector<8x128xbf16>
    %cst = arith.constant dense<0.000000e+00> : vector<8x512xf32>
    %10 = tpu.matmul %9, %5, %cst {dimension_numbers = #tpu.dot_dimension_numbers<[1], [0], [0], [1], [0, 0, 1, 1], [], []>} : vector<8x128xbf16>, vector<128x512xbf16>, vector<8x512xf32> -> vector<8x512xf32>
    %c0_10 = arith.constant 0 : index
    %c0_11 = arith.constant 0 : index
    %c0_12 = arith.constant 0 : index
    %11 = vector.load %arg4[%c0_10, %c0_11, %c0_12] : memref<8x8x512xbf16, #tpu.memory_space<vmem>>, vector<1x8x512xbf16>
    %12 = vector.shape_cast %11 : vector<1x8x512xbf16> to vector<8x512xbf16>
    %13 = arith.extf %12 : vector<8x512xbf16> to vector<8x512xf32>
    %14 = arith.addf %10, %13 : vector<8x512xf32>
    %15 = vector.broadcast %4 : vector<1x512xf32> to vector<8x512xf32>
    %16 = arith.addf %14, %15 : vector<8x512xf32>
    %17 = vector.extract_strided_slice %16 {offsets = [0, 0], sizes = [8, 128], strides = [1, 1]} : vector<8x512xf32> to vector<8x128xf32>
    %cst_13 = arith.constant 5.000000e-01 : f32
    %18 = vector.broadcast %cst_13 : f32 to vector<8x128xf32>
    %19 = arith.mulf %18, %17 : vector<8x128xf32>
    %20 = math.tanh %19 : vector<8x128xf32>
    %cst_14 = arith.constant 5.000000e-01 : f32
    %21 = vector.broadcast %cst_14 : f32 to vector<8x128xf32>
    %22 = arith.mulf %21, %20 : vector<8x128xf32>
    %cst_15 = arith.constant 5.000000e-01 : f32
    %23 = vector.broadcast %cst_15 : f32 to vector<8x128xf32>
    %24 = arith.addf %22, %23 : vector<8x128xf32>
    %25 = vector.extract_strided_slice %16 {offsets = [0, 128], sizes = [8, 128], strides = [1, 1]} : vector<8x512xf32> to vector<8x128xf32>
    %cst_16 = arith.constant 5.000000e-01 : f32
    %26 = vector.broadcast %cst_16 : f32 to vector<8x128xf32>
    %27 = arith.mulf %26, %25 : vector<8x128xf32>
    %28 = math.tanh %27 : vector<8x128xf32>
    %cst_17 = arith.constant 5.000000e-01 : f32
    %29 = vector.broadcast %cst_17 : f32 to vector<8x128xf32>
    %30 = arith.mulf %29, %28 : vector<8x128xf32>
    %cst_18 = arith.constant 5.000000e-01 : f32
    %31 = vector.broadcast %cst_18 : f32 to vector<8x128xf32>
    %32 = arith.addf %30, %31 : vector<8x128xf32>
    %33 = vector.extract_strided_slice %16 {offsets = [0, 256], sizes = [8, 128], strides = [1, 1]} : vector<8x512xf32> to vector<8x128xf32>
    %34 = math.tanh %33 : vector<8x128xf32>
    %35 = vector.extract_strided_slice %16 {offsets = [0, 384], sizes = [8, 128], strides = [1, 1]} : vector<8x512xf32> to vector<8x128xf32>
    %cst_19 = arith.constant 5.000000e-01 : f32
    %36 = vector.broadcast %cst_19 : f32 to vector<8x128xf32>
    %37 = arith.mulf %36, %35 : vector<8x128xf32>
    %38 = math.tanh %37 : vector<8x128xf32>
    %cst_20 = arith.constant 5.000000e-01 : f32
    %39 = vector.broadcast %cst_20 : f32 to vector<8x128xf32>
    %40 = arith.mulf %39, %38 : vector<8x128xf32>
    %cst_21 = arith.constant 5.000000e-01 : f32
    %41 = vector.broadcast %cst_21 : f32 to vector<8x128xf32>
    %42 = arith.addf %40, %41 : vector<8x128xf32>
    %43 = arith.mulf %32, %8 : vector<8x128xf32>
    %44 = arith.mulf %24, %34 : vector<8x128xf32>
    %45 = arith.addf %43, %44 : vector<8x128xf32>
    %46 = math.tanh %45 : vector<8x128xf32>
    %47 = arith.mulf %42, %46 : vector<8x128xf32>
    %c0_i32_22 = arith.constant 0 : i32
    %48 = arith.addi %6, %c0_i32_22 : i32
    %49 = vector.broadcast %48 : i32 to vector<8x1xi32>
    %50 = arith.cmpi slt, %49, %3 : vector<8x1xi32>
    %51 = vector.shape_cast %50 : vector<8x1xi1> to vector<8x1xi1>
    %52 = vector.broadcast %51 : vector<8x1xi1> to vector<8x128xi1>
    %53 = arith.select %52, %47, %7 : vector<8x128xi1>, vector<8x128xf32>
    %c0_23 = arith.constant 0 : index
    %c0_24 = arith.constant 0 : index
    %54 = vector.load %arg9[%c0_23, %c0_24] : memref<8x128xf32, #tpu.memory_space<vmem>>, vector<8x128xf32>
    tpu.vector_store %arg9[%c0_23, %c0_24], %53 {strides = array<i32>} : memref<8x128xf32, #tpu.memory_space<vmem>>, vector<8x128xf32>,
    %55 = vector.shape_cast %50 : vector<8x1xi1> to vector<8x1xi1>
    %56 = vector.broadcast %55 : vector<8x1xi1> to vector<8x128xi1>
    %57 = arith.select %56, %45, %8 : vector<8x128xi1>, vector<8x128xf32>
    %c0_25 = arith.constant 0 : index
    %c0_26 = arith.constant 0 : index
    %58 = vector.load %arg10[%c0_25, %c0_26] : memref<8x128xf32, #tpu.memory_space<vmem>>, vector<8x128xf32>
    tpu.vector_store %arg10[%c0_25, %c0_26], %57 {strides = array<i32>} : memref<8x128xf32, #tpu.memory_space<vmem>>, vector<8x128xf32>,
    %cst_27 = arith.constant 0.000000e+00 : f32
    %59 = vector.shape_cast %50 : vector<8x1xi1> to vector<8x1xi1>
    %60 = vector.broadcast %59 : vector<8x1xi1> to vector<8x128xi1>
    %61 = vector.broadcast %cst_27 : f32 to vector<8x128xf32>
    %62 = arith.select %60, %47, %61 : vector<8x128xi1>, vector<8x128xf32>
    %c0_28 = arith.constant 0 : index
    %c0_29 = arith.constant 0 : index
    %63 = vector.load %arg6[%c0_28, %c0_29] : memref<8x1024xf32, #tpu.memory_space<vmem>>, vector<8x128xf32>
    tpu.vector_store %arg6[%c0_28, %c0_29], %62 {strides = array<i32>} : memref<8x1024xf32, #tpu.memory_space<vmem>>, vector<8x128xf32>,
    %c0_30 = arith.constant 0 : index
    %c0_31 = arith.constant 0 : index
    %64 = vector.load %arg9[%c0_30, %c0_31] : memref<8x128xf32, #tpu.memory_space<vmem>>, vector<8x128xf32>
    %c0_32 = arith.constant 0 : index
    %c0_33 = arith.constant 0 : index
    %65 = vector.load %arg10[%c0_32, %c0_33] : memref<8x128xf32, #tpu.memory_space<vmem>>, vector<8x128xf32>
    %66 = arith.truncf %64 : vector<8x128xf32> to vector<8x128xbf16>
    %cst_34 = arith.constant dense<0.000000e+00> : vector<8x512xf32>
    %67 = tpu.matmul %66, %5, %cst_34 {dimension_numbers = #tpu.dot_dimension_numbers<[1], [0], [0], [1], [0, 0, 1, 1], [], []>} : vector<8x128xbf16>, vector<128x512xbf16>, vector<8x512xf32> -> vector<8x512xf32>
    %c1 = arith.constant 1 : index
    %c0_35 = arith.constant 0 : index
    %c0_36 = arith.constant 0 : index
    %68 = vector.load %arg4[%c1, %c0_35, %c0_36] : memref<8x8x512xbf16, #tpu.memory_space<vmem>>, vector<1x8x512xbf16>
    %69 = vector.shape_cast %68 : vector<1x8x512xbf16> to vector<8x512xbf16>
    %70 = arith.extf %69 : vector<8x512xbf16> to vector<8x512xf32>
    %71 = arith.addf %67, %70 : vector<8x512xf32>
    %72 = vector.broadcast %4 : vector<1x512xf32> to vector<8x512xf32>
    %73 = arith.addf %71, %72 : vector<8x512xf32>
    %74 = vector.extract_strided_slice %73 {offsets = [0, 0], sizes = [8, 128], strides = [1, 1]} : vector<8x512xf32> to vector<8x128xf32>
    %cst_37 = arith.constant 5.000000e-01 : f32
    %75 = vector.broadcast %cst_37 : f32 to vector<8x128xf32>
    %76 = arith.mulf %75, %74 : vector<8x128xf32>
    %77 = math.tanh %76 : vector<8x128xf32>
    %cst_38 = arith.constant 5.000000e-01 : f32
    %78 = vector.broadcast %cst_38 : f32 to vector<8x128xf32>
    %79 = arith.mulf %78, %77 : vector<8x128xf32>
    %cst_39 = arith.constant 5.000000e-01 : f32
    %80 = vector.broadcast %cst_39 : f32 to vector<8x128xf32>
    %81 = arith.addf %79, %80 : vector<8x128xf32>
    %82 = vector.extract_strided_slice %73 {offsets = [0, 128], sizes = [8, 128], strides = [1, 1]} : vector<8x512xf32> to vector<8x128xf32>
    %cst_40 = arith.constant 5.000000e-01 : f32
    %83 = vector.broadcast %cst_40 : f32 to vector<8x128xf32>
    %84 = arith.mulf %83, %82 : vector<8x128xf32>
    %85 = math.tanh %84 : vector<8x128xf32>
    %cst_41 = arith.constant 5.000000e-01 : f32
    %86 = vector.broadcast %cst_41 : f32 to vector<8x128xf32>
    %87 = arith.mulf %86, %85 : vector<8x128xf32>
    %cst_42 = arith.constant 5.000000e-01 : f32
    %88 = vector.broadcast %cst_42 : f32 to vector<8x128xf32>
    %89 = arith.addf %87, %88 : vector<8x128xf32>
    %90 = vector.extract_strided_slice %73 {offsets = [0, 256], sizes = [8, 128], strides = [1, 1]} : vector<8x512xf32> to vector<8x128xf32>
    %91 = math.tanh %90 : vector<8x128xf32>
    %92 = vector.extract_strided_slice %73 {offsets = [0, 384], sizes = [8, 128], strides = [1, 1]} : vector<8x512xf32> to vector<8x128xf32>
    %cst_43 = arith.constant 5.000000e-01 : f32
    %93 = vector.broadcast %cst_43 : f32 to vector<8x128xf32>
    %94 = arith.mulf %93, %92 : vector<8x128xf32>
    %95 = math.tanh %94 : vector<8x128xf32>
    %cst_44 = arith.constant 5.000000e-01 : f32
    %96 = vector.broadcast %cst_44 : f32 to vector<8x128xf32>
    %97 = arith.mulf %96, %95 : vector<8x128xf32>
    %cst_45 = arith.constant 5.000000e-01 : f32
    %98 = vector.broadcast %cst_45 : f32 to vector<8x128xf32>
    %99 = arith.addf %97, %98 : vector<8x128xf32>
    %100 = arith.mulf %89, %65 : vector<8x128xf32>
    %101 = arith.mulf %81, %91 : vector<8x128xf32>
    %102 = arith.addf %100, %101 : vector<8x128xf32>
    %103 = math.tanh %102 : vector<8x128xf32>
    %104 = arith.mulf %99, %103 : vector<8x128xf32>
    %c1_i32 = arith.constant 1 : i32
    %105 = arith.addi %6, %c1_i32 : i32
    %106 = vector.broadcast %105 : i32 to vector<8x1xi32>
    %107 = arith.cmpi slt, %106, %3 : vector<8x1xi32>
    %108 = vector.shape_cast %107 : vector<8x1xi1> to vector<8x1xi1>
    %109 = vector.broadcast %108 : vector<8x1xi1> to vector<8x128xi1>
    %110 = arith.select %109, %104, %64 : vector<8x128xi1>, vector<8x128xf32>
    %c0_46 = arith.constant 0 : index
    %c0_47 = arith.constant 0 : index
    %111 = vector.load %arg9[%c0_46, %c0_47] : memref<8x128xf32, #tpu.memory_space<vmem>>, vector<8x128xf32>
    tpu.vector_store %arg9[%c0_46, %c0_47], %110 {strides = array<i32>} : memref<8x128xf32, #tpu.memory_space<vmem>>, vector<8x128xf32>,
    %112 = vector.shape_cast %107 : vector<8x1xi1> to vector<8x1xi1>
    %113 = vector.broadcast %112 : vector<8x1xi1> to vector<8x128xi1>
    %114 = arith.select %113, %102, %65 : vector<8x128xi1>, vector<8x128xf32>
    %c0_48 = arith.constant 0 : index
    %c0_49 = arith.constant 0 : index
    %115 = vector.load %arg10[%c0_48, %c0_49] : memref<8x128xf32, #tpu.memory_space<vmem>>, vector<8x128xf32>
    tpu.vector_store %arg10[%c0_48, %c0_49], %114 {strides = array<i32>} : memref<8x128xf32, #tpu.memory_space<vmem>>, vector<8x128xf32>,
    %cst_50 = arith.constant 0.000000e+00 : f32
    %116 = vector.shape_cast %107 : vector<8x1xi1> to vector<8x1xi1>
    %117 = vector.broadcast %116 : vector<8x1xi1> to vector<8x128xi1>
    %118 = vector.broadcast %cst_50 : f32 to vector<8x128xf32>
    %119 = arith.select %117, %104, %118 : vector<8x128xi1>, vector<8x128xf32>
    %c0_51 = arith.constant 0 : index
    %c128 = arith.constant 128 : index
    %120 = vector.load %arg6[%c0_51, %c128] : memref<8x1024xf32, #tpu.memory_space<vmem>>, vector<8x128xf32>
    tpu.vector_store %arg6[%c0_51, %c128], %119 {strides = array<i32>} : memref<8x1024xf32, #tpu.memory_space<vmem>>, vector<8x128xf32>,
    %c0_52 = arith.constant 0 : index
    %c0_53 = arith.constant 0 : index
    %121 = vector.load %arg9[%c0_52, %c0_53] : memref<8x128xf32, #tpu.memory_space<vmem>>, vector<8x128xf32>
    %c0_54 = arith.constant 0 : index
    %c0_55 = arith.constant 0 : index
    %122 = vector.load %arg10[%c0_54, %c0_55] : memref<8x128xf32, #tpu.memory_space<vmem>>, vector<8x128xf32>
    %123 = arith.truncf %121 : vector<8x128xf32> to vector<8x128xbf16>
    %cst_56 = arith.constant dense<0.000000e+00> : vector<8x512xf32>
    %124 = tpu.matmul %123, %5, %cst_56 {dimension_numbers = #tpu.dot_dimension_numbers<[1], [0], [0], [1], [0, 0, 1, 1], [], []>} : vector<8x128xbf16>, vector<128x512xbf16>, vector<8x512xf32> -> vector<8x512xf32>
    %c2 = arith.constant 2 : index
    %c0_57 = arith.constant 0 : index
    %c0_58 = arith.constant 0 : index
    %125 = vector.load %arg4[%c2, %c0_57, %c0_58] : memref<8x8x512xbf16, #tpu.memory_space<vmem>>, vector<1x8x512xbf16>
    %126 = vector.shape_cast %125 : vector<1x8x512xbf16> to vector<8x512xbf16>
    %127 = arith.extf %126 : vector<8x512xbf16> to vector<8x512xf32>
    %128 = arith.addf %124, %127 : vector<8x512xf32>
    %129 = vector.broadcast %4 : vector<1x512xf32> to vector<8x512xf32>
    %130 = arith.addf %128, %129 : vector<8x512xf32>
    %131 = vector.extract_strided_slice %130 {offsets = [0, 0], sizes = [8, 128], strides = [1, 1]} : vector<8x512xf32> to vector<8x128xf32>
    %cst_59 = arith.constant 5.000000e-01 : f32
    %132 = vector.broadcast %cst_59 : f32 to vector<8x128xf32>
    %133 = arith.mulf %132, %131 : vector<8x128xf32>
    %134 = math.tanh %133 : vector<8x128xf32>
    %cst_60 = arith.constant 5.000000e-01 : f32
    %135 = vector.broadcast %cst_60 : f32 to vector<8x128xf32>
    %136 = arith.mulf %135, %134 : vector<8x128xf32>
    %cst_61 = arith.constant 5.000000e-01 : f32
    %137 = vector.broadcast %cst_61 : f32 to vector<8x128xf32>
    %138 = arith.addf %136, %137 : vector<8x128xf32>
    %139 = vector.extract_strided_slice %130 {offsets = [0, 128], sizes = [8, 128], strides = [1, 1]} : vector<8x512xf32> to vector<8x128xf32>
    %cst_62 = arith.constant 5.000000e-01 : f32
    %140 = vector.broadcast %cst_62 : f32 to vector<8x128xf32>
    %141 = arith.mulf %140, %139 : vector<8x128xf32>
    %142 = math.tanh %141 : vector<8x128xf32>
    %cst_63 = arith.constant 5.000000e-01 : f32
    %143 = vector.broadcast %cst_63 : f32 to vector<8x128xf32>
    %144 = arith.mulf %143, %142 : vector<8x128xf32>
    %cst_64 = arith.constant 5.000000e-01 : f32
    %145 = vector.broadcast %cst_64 : f32 to vector<8x128xf32>
    %146 = arith.addf %144, %145 : vector<8x128xf32>
    %147 = vector.extract_strided_slice %130 {offsets = [0, 256], sizes = [8, 128], strides = [1, 1]} : vector<8x512xf32> to vector<8x128xf32>
    %148 = math.tanh %147 : vector<8x128xf32>
    %149 = vector.extract_strided_slice %130 {offsets = [0, 384], sizes = [8, 128], strides = [1, 1]} : vector<8x512xf32> to vector<8x128xf32>
    %cst_65 = arith.constant 5.000000e-01 : f32
    %150 = vector.broadcast %cst_65 : f32 to vector<8x128xf32>
    %151 = arith.mulf %150, %149 : vector<8x128xf32>
    %152 = math.tanh %151 : vector<8x128xf32>
    %cst_66 = arith.constant 5.000000e-01 : f32
    %153 = vector.broadcast %cst_66 : f32 to vector<8x128xf32>
    %154 = arith.mulf %153, %152 : vector<8x128xf32>
    %cst_67 = arith.constant 5.000000e-01 : f32
    %155 = vector.broadcast %cst_67 : f32 to vector<8x128xf32>
    %156 = arith.addf %154, %155 : vector<8x128xf32>
    %157 = arith.mulf %146, %122 : vector<8x128xf32>
    %158 = arith.mulf %138, %148 : vector<8x128xf32>
    %159 = arith.addf %157, %158 : vector<8x128xf32>
    %160 = math.tanh %159 : vector<8x128xf32>
    %161 = arith.mulf %156, %160 : vector<8x128xf32>
    %c2_i32 = arith.constant 2 : i32
    %162 = arith.addi %6, %c2_i32 : i32
    %163 = vector.broadcast %162 : i32 to vector<8x1xi32>
    %164 = arith.cmpi slt, %163, %3 : vector<8x1xi32>
    %165 = vector.shape_cast %164 : vector<8x1xi1> to vector<8x1xi1>
    %166 = vector.broadcast %165 : vector<8x1xi1> to vector<8x128xi1>
    %167 = arith.select %166, %161, %121 : vector<8x128xi1>, vector<8x128xf32>
    %c0_68 = arith.constant 0 : index
    %c0_69 = arith.constant 0 : index
    %168 = vector.load %arg9[%c0_68, %c0_69] : memref<8x128xf32, #tpu.memory_space<vmem>>, vector<8x128xf32>
    tpu.vector_store %arg9[%c0_68, %c0_69], %167 {strides = array<i32>} : memref<8x128xf32, #tpu.memory_space<vmem>>, vector<8x128xf32>,
    %169 = vector.shape_cast %164 : vector<8x1xi1> to vector<8x1xi1>
    %170 = vector.broadcast %169 : vector<8x1xi1> to vector<8x128xi1>
    %171 = arith.select %170, %159, %122 : vector<8x128xi1>, vector<8x128xf32>
    %c0_70 = arith.constant 0 : index
    %c0_71 = arith.constant 0 : index
    %172 = vector.load %arg10[%c0_70, %c0_71] : memref<8x128xf32, #tpu.memory_space<vmem>>, vector<8x128xf32>
    tpu.vector_store %arg10[%c0_70, %c0_71], %171 {strides = array<i32>} : memref<8x128xf32, #tpu.memory_space<vmem>>, vector<8x128xf32>,
    %cst_72 = arith.constant 0.000000e+00 : f32
    %173 = vector.shape_cast %164 : vector<8x1xi1> to vector<8x1xi1>
    %174 = vector.broadcast %173 : vector<8x1xi1> to vector<8x128xi1>
    %175 = vector.broadcast %cst_72 : f32 to vector<8x128xf32>
    %176 = arith.select %174, %161, %175 : vector<8x128xi1>, vector<8x128xf32>
    %c0_73 = arith.constant 0 : index
    %c256 = arith.constant 256 : index
    %177 = vector.load %arg6[%c0_73, %c256] : memref<8x1024xf32, #tpu.memory_space<vmem>>, vector<8x128xf32>
    tpu.vector_store %arg6[%c0_73, %c256], %176 {strides = array<i32>} : memref<8x1024xf32, #tpu.memory_space<vmem>>, vector<8x128xf32>,
    %c0_74 = arith.constant 0 : index
    %c0_75 = arith.constant 0 : index
    %178 = vector.load %arg9[%c0_74, %c0_75] : memref<8x128xf32, #tpu.memory_space<vmem>>, vector<8x128xf32>
    %c0_76 = arith.constant 0 : index
    %c0_77 = arith.constant 0 : index
    %179 = vector.load %arg10[%c0_76, %c0_77] : memref<8x128xf32, #tpu.memory_space<vmem>>, vector<8x128xf32>
    %180 = arith.truncf %178 : vector<8x128xf32> to vector<8x128xbf16>
    %cst_78 = arith.constant dense<0.000000e+00> : vector<8x512xf32>
    %181 = tpu.matmul %180, %5, %cst_78 {dimension_numbers = #tpu.dot_dimension_numbers<[1], [0], [0], [1], [0, 0, 1, 1], [], []>} : vector<8x128xbf16>, vector<128x512xbf16>, vector<8x512xf32> -> vector<8x512xf32>
    %c3 = arith.constant 3 : index
    %c0_79 = arith.constant 0 : index
    %c0_80 = arith.constant 0 : index
    %182 = vector.load %arg4[%c3, %c0_79, %c0_80] : memref<8x8x512xbf16, #tpu.memory_space<vmem>>, vector<1x8x512xbf16>
    %183 = vector.shape_cast %182 : vector<1x8x512xbf16> to vector<8x512xbf16>
    %184 = arith.extf %183 : vector<8x512xbf16> to vector<8x512xf32>
    %185 = arith.addf %181, %184 : vector<8x512xf32>
    %186 = vector.broadcast %4 : vector<1x512xf32> to vector<8x512xf32>
    %187 = arith.addf %185, %186 : vector<8x512xf32>
    %188 = vector.extract_strided_slice %187 {offsets = [0, 0], sizes = [8, 128], strides = [1, 1]} : vector<8x512xf32> to vector<8x128xf32>
    %cst_81 = arith.constant 5.000000e-01 : f32
    %189 = vector.broadcast %cst_81 : f32 to vector<8x128xf32>
    %190 = arith.mulf %189, %188 : vector<8x128xf32>
    %191 = math.tanh %190 : vector<8x128xf32>
    %cst_82 = arith.constant 5.000000e-01 : f32
    %192 = vector.broadcast %cst_82 : f32 to vector<8x128xf32>
    %193 = arith.mulf %192, %191 : vector<8x128xf32>
    %cst_83 = arith.constant 5.000000e-01 : f32
    %194 = vector.broadcast %cst_83 : f32 to vector<8x128xf32>
    %195 = arith.addf %193, %194 : vector<8x128xf32>
    %196 = vector.extract_strided_slice %187 {offsets = [0, 128], sizes = [8, 128], strides = [1, 1]} : vector<8x512xf32> to vector<8x128xf32>
    %cst_84 = arith.constant 5.000000e-01 : f32
    %197 = vector.broadcast %cst_84 : f32 to vector<8x128xf32>
    %198 = arith.mulf %197, %196 : vector<8x128xf32>
    %199 = math.tanh %198 : vector<8x128xf32>
    %cst_85 = arith.constant 5.000000e-01 : f32
    %200 = vector.broadcast %cst_85 : f32 to vector<8x128xf32>
    %201 = arith.mulf %200, %199 : vector<8x128xf32>
    %cst_86 = arith.constant 5.000000e-01 : f32
    %202 = vector.broadcast %cst_86 : f32 to vector<8x128xf32>
    %203 = arith.addf %201, %202 : vector<8x128xf32>
    %204 = vector.extract_strided_slice %187 {offsets = [0, 256], sizes = [8, 128], strides = [1, 1]} : vector<8x512xf32> to vector<8x128xf32>
    %205 = math.tanh %204 : vector<8x128xf32>
    %206 = vector.extract_strided_slice %187 {offsets = [0, 384], sizes = [8, 128], strides = [1, 1]} : vector<8x512xf32> to vector<8x128xf32>
    %cst_87 = arith.constant 5.000000e-01 : f32
    %207 = vector.broadcast %cst_87 : f32 to vector<8x128xf32>
    %208 = arith.mulf %207, %206 : vector<8x128xf32>
    %209 = math.tanh %208 : vector<8x128xf32>
    %cst_88 = arith.constant 5.000000e-01 : f32
    %210 = vector.broadcast %cst_88 : f32 to vector<8x128xf32>
    %211 = arith.mulf %210, %209 : vector<8x128xf32>
    %cst_89 = arith.constant 5.000000e-01 : f32
    %212 = vector.broadcast %cst_89 : f32 to vector<8x128xf32>
    %213 = arith.addf %211, %212 : vector<8x128xf32>
    %214 = arith.mulf %203, %179 : vector<8x128xf32>
    %215 = arith.mulf %195, %205 : vector<8x128xf32>
    %216 = arith.addf %214, %215 : vector<8x128xf32>
    %217 = math.tanh %216 : vector<8x128xf32>
    %218 = arith.mulf %213, %217 : vector<8x128xf32>
    %c3_i32 = arith.constant 3 : i32
    %219 = arith.addi %6, %c3_i32 : i32
    %220 = vector.broadcast %219 : i32 to vector<8x1xi32>
    %221 = arith.cmpi slt, %220, %3 : vector<8x1xi32>
    %222 = vector.shape_cast %221 : vector<8x1xi1> to vector<8x1xi1>
    %223 = vector.broadcast %222 : vector<8x1xi1> to vector<8x128xi1>
    %224 = arith.select %223, %218, %178 : vector<8x128xi1>, vector<8x128xf32>
    %c0_90 = arith.constant 0 : index
    %c0_91 = arith.constant 0 : index
    %225 = vector.load %arg9[%c0_90, %c0_91] : memref<8x128xf32, #tpu.memory_space<vmem>>, vector<8x128xf32>
    tpu.vector_store %arg9[%c0_90, %c0_91], %224 {strides = array<i32>} : memref<8x128xf32, #tpu.memory_space<vmem>>, vector<8x128xf32>,
    %226 = vector.shape_cast %221 : vector<8x1xi1> to vector<8x1xi1>
    %227 = vector.broadcast %226 : vector<8x1xi1> to vector<8x128xi1>
    %228 = arith.select %227, %216, %179 : vector<8x128xi1>, vector<8x128xf32>
    %c0_92 = arith.constant 0 : index
    %c0_93 = arith.constant 0 : index
    %229 = vector.load %arg10[%c0_92, %c0_93] : memref<8x128xf32, #tpu.memory_space<vmem>>, vector<8x128xf32>
    tpu.vector_store %arg10[%c0_92, %c0_93], %228 {strides = array<i32>} : memref<8x128xf32, #tpu.memory_space<vmem>>, vector<8x128xf32>,
    %cst_94 = arith.constant 0.000000e+00 : f32
    %230 = vector.shape_cast %221 : vector<8x1xi1> to vector<8x1xi1>
    %231 = vector.broadcast %230 : vector<8x1xi1> to vector<8x128xi1>
    %232 = vector.broadcast %cst_94 : f32 to vector<8x128xf32>
    %233 = arith.select %231, %218, %232 : vector<8x128xi1>, vector<8x128xf32>
    %c0_95 = arith.constant 0 : index
    %c384 = arith.constant 384 : index
    %234 = vector.load %arg6[%c0_95, %c384] : memref<8x1024xf32, #tpu.memory_space<vmem>>, vector<8x128xf32>
    tpu.vector_store %arg6[%c0_95, %c384], %233 {strides = array<i32>} : memref<8x1024xf32, #tpu.memory_space<vmem>>, vector<8x128xf32>,
    %c0_96 = arith.constant 0 : index
    %c0_97 = arith.constant 0 : index
    %235 = vector.load %arg9[%c0_96, %c0_97] : memref<8x128xf32, #tpu.memory_space<vmem>>, vector<8x128xf32>
    %c0_98 = arith.constant 0 : index
    %c0_99 = arith.constant 0 : index
    %236 = vector.load %arg10[%c0_98, %c0_99] : memref<8x128xf32, #tpu.memory_space<vmem>>, vector<8x128xf32>
    %237 = arith.truncf %235 : vector<8x128xf32> to vector<8x128xbf16>
    %cst_100 = arith.constant dense<0.000000e+00> : vector<8x512xf32>
    %238 = tpu.matmul %237, %5, %cst_100 {dimension_numbers = #tpu.dot_dimension_numbers<[1], [0], [0], [1], [0, 0, 1, 1], [], []>} : vector<8x128xbf16>, vector<128x512xbf16>, vector<8x512xf32> -> vector<8x512xf32>
    %c4 = arith.constant 4 : index
    %c0_101 = arith.constant 0 : index
    %c0_102 = arith.constant 0 : index
    %239 = vector.load %arg4[%c4, %c0_101, %c0_102] : memref<8x8x512xbf16, #tpu.memory_space<vmem>>, vector<1x8x512xbf16>
    %240 = vector.shape_cast %239 : vector<1x8x512xbf16> to vector<8x512xbf16>
    %241 = arith.extf %240 : vector<8x512xbf16> to vector<8x512xf32>
    %242 = arith.addf %238, %241 : vector<8x512xf32>
    %243 = vector.broadcast %4 : vector<1x512xf32> to vector<8x512xf32>
    %244 = arith.addf %242, %243 : vector<8x512xf32>
    %245 = vector.extract_strided_slice %244 {offsets = [0, 0], sizes = [8, 128], strides = [1, 1]} : vector<8x512xf32> to vector<8x128xf32>
    %cst_103 = arith.constant 5.000000e-01 : f32
    %246 = vector.broadcast %cst_103 : f32 to vector<8x128xf32>
    %247 = arith.mulf %246, %245 : vector<8x128xf32>
    %248 = math.tanh %247 : vector<8x128xf32>
    %cst_104 = arith.constant 5.000000e-01 : f32
    %249 = vector.broadcast %cst_104 : f32 to vector<8x128xf32>
    %250 = arith.mulf %249, %248 : vector<8x128xf32>
    %cst_105 = arith.constant 5.000000e-01 : f32
    %251 = vector.broadcast %cst_105 : f32 to vector<8x128xf32>
    %252 = arith.addf %250, %251 : vector<8x128xf32>
    %253 = vector.extract_strided_slice %244 {offsets = [0, 128], sizes = [8, 128], strides = [1, 1]} : vector<8x512xf32> to vector<8x128xf32>
    %cst_106 = arith.constant 5.000000e-01 : f32
    %254 = vector.broadcast %cst_106 : f32 to vector<8x128xf32>
    %255 = arith.mulf %254, %253 : vector<8x128xf32>
    %256 = math.tanh %255 : vector<8x128xf32>
    %cst_107 = arith.constant 5.000000e-01 : f32
    %257 = vector.broadcast %cst_107 : f32 to vector<8x128xf32>
    %258 = arith.mulf %257, %256 : vector<8x128xf32>
    %cst_108 = arith.constant 5.000000e-01 : f32
    %259 = vector.broadcast %cst_108 : f32 to vector<8x128xf32>
    %260 = arith.addf %258, %259 : vector<8x128xf32>
    %261 = vector.extract_strided_slice %244 {offsets = [0, 256], sizes = [8, 128], strides = [1, 1]} : vector<8x512xf32> to vector<8x128xf32>
    %262 = math.tanh %261 : vector<8x128xf32>
    %263 = vector.extract_strided_slice %244 {offsets = [0, 384], sizes = [8, 128], strides = [1, 1]} : vector<8x512xf32> to vector<8x128xf32>
    %cst_109 = arith.constant 5.000000e-01 : f32
    %264 = vector.broadcast %cst_109 : f32 to vector<8x128xf32>
    %265 = arith.mulf %264, %263 : vector<8x128xf32>
    %266 = math.tanh %265 : vector<8x128xf32>
    %cst_110 = arith.constant 5.000000e-01 : f32
    %267 = vector.broadcast %cst_110 : f32 to vector<8x128xf32>
    %268 = arith.mulf %267, %266 : vector<8x128xf32>
    %cst_111 = arith.constant 5.000000e-01 : f32
    %269 = vector.broadcast %cst_111 : f32 to vector<8x128xf32>
    %270 = arith.addf %268, %269 : vector<8x128xf32>
    %271 = arith.mulf %260, %236 : vector<8x128xf32>
    %272 = arith.mulf %252, %262 : vector<8x128xf32>
    %273 = arith.addf %271, %272 : vector<8x128xf32>
    %274 = math.tanh %273 : vector<8x128xf32>
    %275 = arith.mulf %270, %274 : vector<8x128xf32>
    %c4_i32 = arith.constant 4 : i32
    %276 = arith.addi %6, %c4_i32 : i32
    %277 = vector.broadcast %276 : i32 to vector<8x1xi32>
    %278 = arith.cmpi slt, %277, %3 : vector<8x1xi32>
    %279 = vector.shape_cast %278 : vector<8x1xi1> to vector<8x1xi1>
    %280 = vector.broadcast %279 : vector<8x1xi1> to vector<8x128xi1>
    %281 = arith.select %280, %275, %235 : vector<8x128xi1>, vector<8x128xf32>
    %c0_112 = arith.constant 0 : index
    %c0_113 = arith.constant 0 : index
    %282 = vector.load %arg9[%c0_112, %c0_113] : memref<8x128xf32, #tpu.memory_space<vmem>>, vector<8x128xf32>
    tpu.vector_store %arg9[%c0_112, %c0_113], %281 {strides = array<i32>} : memref<8x128xf32, #tpu.memory_space<vmem>>, vector<8x128xf32>,
    %283 = vector.shape_cast %278 : vector<8x1xi1> to vector<8x1xi1>
    %284 = vector.broadcast %283 : vector<8x1xi1> to vector<8x128xi1>
    %285 = arith.select %284, %273, %236 : vector<8x128xi1>, vector<8x128xf32>
    %c0_114 = arith.constant 0 : index
    %c0_115 = arith.constant 0 : index
    %286 = vector.load %arg10[%c0_114, %c0_115] : memref<8x128xf32, #tpu.memory_space<vmem>>, vector<8x128xf32>
    tpu.vector_store %arg10[%c0_114, %c0_115], %285 {strides = array<i32>} : memref<8x128xf32, #tpu.memory_space<vmem>>, vector<8x128xf32>,
    %cst_116 = arith.constant 0.000000e+00 : f32
    %287 = vector.shape_cast %278 : vector<8x1xi1> to vector<8x1xi1>
    %288 = vector.broadcast %287 : vector<8x1xi1> to vector<8x128xi1>
    %289 = vector.broadcast %cst_116 : f32 to vector<8x128xf32>
    %290 = arith.select %288, %275, %289 : vector<8x128xi1>, vector<8x128xf32>
    %c0_117 = arith.constant 0 : index
    %c512 = arith.constant 512 : index
    %291 = vector.load %arg6[%c0_117, %c512] : memref<8x1024xf32, #tpu.memory_space<vmem>>, vector<8x128xf32>
    tpu.vector_store %arg6[%c0_117, %c512], %290 {strides = array<i32>} : memref<8x1024xf32, #tpu.memory_space<vmem>>, vector<8x128xf32>,
    %c0_118 = arith.constant 0 : index
    %c0_119 = arith.constant 0 : index
    %292 = vector.load %arg9[%c0_118, %c0_119] : memref<8x128xf32, #tpu.memory_space<vmem>>, vector<8x128xf32>
    %c0_120 = arith.constant 0 : index
    %c0_121 = arith.constant 0 : index
    %293 = vector.load %arg10[%c0_120, %c0_121] : memref<8x128xf32, #tpu.memory_space<vmem>>, vector<8x128xf32>
    %294 = arith.truncf %292 : vector<8x128xf32> to vector<8x128xbf16>
    %cst_122 = arith.constant dense<0.000000e+00> : vector<8x512xf32>
    %295 = tpu.matmul %294, %5, %cst_122 {dimension_numbers = #tpu.dot_dimension_numbers<[1], [0], [0], [1], [0, 0, 1, 1], [], []>} : vector<8x128xbf16>, vector<128x512xbf16>, vector<8x512xf32> -> vector<8x512xf32>
    %c5 = arith.constant 5 : index
    %c0_123 = arith.constant 0 : index
    %c0_124 = arith.constant 0 : index
    %296 = vector.load %arg4[%c5, %c0_123, %c0_124] : memref<8x8x512xbf16, #tpu.memory_space<vmem>>, vector<1x8x512xbf16>
    %297 = vector.shape_cast %296 : vector<1x8x512xbf16> to vector<8x512xbf16>
    %298 = arith.extf %297 : vector<8x512xbf16> to vector<8x512xf32>
    %299 = arith.addf %295, %298 : vector<8x512xf32>
    %300 = vector.broadcast %4 : vector<1x512xf32> to vector<8x512xf32>
    %301 = arith.addf %299, %300 : vector<8x512xf32>
    %302 = vector.extract_strided_slice %301 {offsets = [0, 0], sizes = [8, 128], strides = [1, 1]} : vector<8x512xf32> to vector<8x128xf32>
    %cst_125 = arith.constant 5.000000e-01 : f32
    %303 = vector.broadcast %cst_125 : f32 to vector<8x128xf32>
    %304 = arith.mulf %303, %302 : vector<8x128xf32>
    %305 = math.tanh %304 : vector<8x128xf32>
    %cst_126 = arith.constant 5.000000e-01 : f32
    %306 = vector.broadcast %cst_126 : f32 to vector<8x128xf32>
    %307 = arith.mulf %306, %305 : vector<8x128xf32>
    %cst_127 = arith.constant 5.000000e-01 : f32
    %308 = vector.broadcast %cst_127 : f32 to vector<8x128xf32>
    %309 = arith.addf %307, %308 : vector<8x128xf32>
    %310 = vector.extract_strided_slice %301 {offsets = [0, 128], sizes = [8, 128], strides = [1, 1]} : vector<8x512xf32> to vector<8x128xf32>
    %cst_128 = arith.constant 5.000000e-01 : f32
    %311 = vector.broadcast %cst_128 : f32 to vector<8x128xf32>
    %312 = arith.mulf %311, %310 : vector<8x128xf32>
    %313 = math.tanh %312 : vector<8x128xf32>
    %cst_129 = arith.constant 5.000000e-01 : f32
    %314 = vector.broadcast %cst_129 : f32 to vector<8x128xf32>
    %315 = arith.mulf %314, %313 : vector<8x128xf32>
    %cst_130 = arith.constant 5.000000e-01 : f32
    %316 = vector.broadcast %cst_130 : f32 to vector<8x128xf32>
    %317 = arith.addf %315, %316 : vector<8x128xf32>
    %318 = vector.extract_strided_slice %301 {offsets = [0, 256], sizes = [8, 128], strides = [1, 1]} : vector<8x512xf32> to vector<8x128xf32>
    %319 = math.tanh %318 : vector<8x128xf32>
    %320 = vector.extract_strided_slice %301 {offsets = [0, 384], sizes = [8, 128], strides = [1, 1]} : vector<8x512xf32> to vector<8x128xf32>
    %cst_131 = arith.constant 5.000000e-01 : f32
    %321 = vector.broadcast %cst_131 : f32 to vector<8x128xf32>
    %322 = arith.mulf %321, %320 : vector<8x128xf32>
    %323 = math.tanh %322 : vector<8x128xf32>
    %cst_132 = arith.constant 5.000000e-01 : f32
    %324 = vector.broadcast %cst_132 : f32 to vector<8x128xf32>
    %325 = arith.mulf %324, %323 : vector<8x128xf32>
    %cst_133 = arith.constant 5.000000e-01 : f32
    %326 = vector.broadcast %cst_133 : f32 to vector<8x128xf32>
    %327 = arith.addf %325, %326 : vector<8x128xf32>
    %328 = arith.mulf %317, %293 : vector<8x128xf32>
    %329 = arith.mulf %309, %319 : vector<8x128xf32>
    %330 = arith.addf %328, %329 : vector<8x128xf32>
    %331 = math.tanh %330 : vector<8x128xf32>
    %332 = arith.mulf %327, %331 : vector<8x128xf32>
    %c5_i32 = arith.constant 5 : i32
    %333 = arith.addi %6, %c5_i32 : i32
    %334 = vector.broadcast %333 : i32 to vector<8x1xi32>
    %335 = arith.cmpi slt, %334, %3 : vector<8x1xi32>
    %336 = vector.shape_cast %335 : vector<8x1xi1> to vector<8x1xi1>
    %337 = vector.broadcast %336 : vector<8x1xi1> to vector<8x128xi1>
    %338 = arith.select %337, %332, %292 : vector<8x128xi1>, vector<8x128xf32>
    %c0_134 = arith.constant 0 : index
    %c0_135 = arith.constant 0 : index
    %339 = vector.load %arg9[%c0_134, %c0_135] : memref<8x128xf32, #tpu.memory_space<vmem>>, vector<8x128xf32>
    tpu.vector_store %arg9[%c0_134, %c0_135], %338 {strides = array<i32>} : memref<8x128xf32, #tpu.memory_space<vmem>>, vector<8x128xf32>,
    %340 = vector.shape_cast %335 : vector<8x1xi1> to vector<8x1xi1>
    %341 = vector.broadcast %340 : vector<8x1xi1> to vector<8x128xi1>
    %342 = arith.select %341, %330, %293 : vector<8x128xi1>, vector<8x128xf32>
    %c0_136 = arith.constant 0 : index
    %c0_137 = arith.constant 0 : index
    %343 = vector.load %arg10[%c0_136, %c0_137] : memref<8x128xf32, #tpu.memory_space<vmem>>, vector<8x128xf32>
    tpu.vector_store %arg10[%c0_136, %c0_137], %342 {strides = array<i32>} : memref<8x128xf32, #tpu.memory_space<vmem>>, vector<8x128xf32>,
    %cst_138 = arith.constant 0.000000e+00 : f32
    %344 = vector.shape_cast %335 : vector<8x1xi1> to vector<8x1xi1>
    %345 = vector.broadcast %344 : vector<8x1xi1> to vector<8x128xi1>
    %346 = vector.broadcast %cst_138 : f32 to vector<8x128xf32>
    %347 = arith.select %345, %332, %346 : vector<8x128xi1>, vector<8x128xf32>
    %c0_139 = arith.constant 0 : index
    %c640 = arith.constant 640 : index
    %348 = vector.load %arg6[%c0_139, %c640] : memref<8x1024xf32, #tpu.memory_space<vmem>>, vector<8x128xf32>
    tpu.vector_store %arg6[%c0_139, %c640], %347 {strides = array<i32>} : memref<8x1024xf32, #tpu.memory_space<vmem>>, vector<8x128xf32>,
    %c0_140 = arith.constant 0 : index
    %c0_141 = arith.constant 0 : index
    %349 = vector.load %arg9[%c0_140, %c0_141] : memref<8x128xf32, #tpu.memory_space<vmem>>, vector<8x128xf32>
    %c0_142 = arith.constant 0 : index
    %c0_143 = arith.constant 0 : index
    %350 = vector.load %arg10[%c0_142, %c0_143] : memref<8x128xf32, #tpu.memory_space<vmem>>, vector<8x128xf32>
    %351 = arith.truncf %349 : vector<8x128xf32> to vector<8x128xbf16>
    %cst_144 = arith.constant dense<0.000000e+00> : vector<8x512xf32>
    %352 = tpu.matmul %351, %5, %cst_144 {dimension_numbers = #tpu.dot_dimension_numbers<[1], [0], [0], [1], [0, 0, 1, 1], [], []>} : vector<8x128xbf16>, vector<128x512xbf16>, vector<8x512xf32> -> vector<8x512xf32>
    %c6 = arith.constant 6 : index
    %c0_145 = arith.constant 0 : index
    %c0_146 = arith.constant 0 : index
    %353 = vector.load %arg4[%c6, %c0_145, %c0_146] : memref<8x8x512xbf16, #tpu.memory_space<vmem>>, vector<1x8x512xbf16>
    %354 = vector.shape_cast %353 : vector<1x8x512xbf16> to vector<8x512xbf16>
    %355 = arith.extf %354 : vector<8x512xbf16> to vector<8x512xf32>
    %356 = arith.addf %352, %355 : vector<8x512xf32>
    %357 = vector.broadcast %4 : vector<1x512xf32> to vector<8x512xf32>
    %358 = arith.addf %356, %357 : vector<8x512xf32>
    %359 = vector.extract_strided_slice %358 {offsets = [0, 0], sizes = [8, 128], strides = [1, 1]} : vector<8x512xf32> to vector<8x128xf32>
    %cst_147 = arith.constant 5.000000e-01 : f32
    %360 = vector.broadcast %cst_147 : f32 to vector<8x128xf32>
    %361 = arith.mulf %360, %359 : vector<8x128xf32>
    %362 = math.tanh %361 : vector<8x128xf32>
    %cst_148 = arith.constant 5.000000e-01 : f32
    %363 = vector.broadcast %cst_148 : f32 to vector<8x128xf32>
    %364 = arith.mulf %363, %362 : vector<8x128xf32>
    %cst_149 = arith.constant 5.000000e-01 : f32
    %365 = vector.broadcast %cst_149 : f32 to vector<8x128xf32>
    %366 = arith.addf %364, %365 : vector<8x128xf32>
    %367 = vector.extract_strided_slice %358 {offsets = [0, 128], sizes = [8, 128], strides = [1, 1]} : vector<8x512xf32> to vector<8x128xf32>
    %cst_150 = arith.constant 5.000000e-01 : f32
    %368 = vector.broadcast %cst_150 : f32 to vector<8x128xf32>
    %369 = arith.mulf %368, %367 : vector<8x128xf32>
    %370 = math.tanh %369 : vector<8x128xf32>
    %cst_151 = arith.constant 5.000000e-01 : f32
    %371 = vector.broadcast %cst_151 : f32 to vector<8x128xf32>
    %372 = arith.mulf %371, %370 : vector<8x128xf32>
    %cst_152 = arith.constant 5.000000e-01 : f32
    %373 = vector.broadcast %cst_152 : f32 to vector<8x128xf32>
    %374 = arith.addf %372, %373 : vector<8x128xf32>
    %375 = vector.extract_strided_slice %358 {offsets = [0, 256], sizes = [8, 128], strides = [1, 1]} : vector<8x512xf32> to vector<8x128xf32>
    %376 = math.tanh %375 : vector<8x128xf32>
    %377 = vector.extract_strided_slice %358 {offsets = [0, 384], sizes = [8, 128], strides = [1, 1]} : vector<8x512xf32> to vector<8x128xf32>
    %cst_153 = arith.constant 5.000000e-01 : f32
    %378 = vector.broadcast %cst_153 : f32 to vector<8x128xf32>
    %379 = arith.mulf %378, %377 : vector<8x128xf32>
    %380 = math.tanh %379 : vector<8x128xf32>
    %cst_154 = arith.constant 5.000000e-01 : f32
    %381 = vector.broadcast %cst_154 : f32 to vector<8x128xf32>
    %382 = arith.mulf %381, %380 : vector<8x128xf32>
    %cst_155 = arith.constant 5.000000e-01 : f32
    %383 = vector.broadcast %cst_155 : f32 to vector<8x128xf32>
    %384 = arith.addf %382, %383 : vector<8x128xf32>
    %385 = arith.mulf %374, %350 : vector<8x128xf32>
    %386 = arith.mulf %366, %376 : vector<8x128xf32>
    %387 = arith.addf %385, %386 : vector<8x128xf32>
    %388 = math.tanh %387 : vector<8x128xf32>
    %389 = arith.mulf %384, %388 : vector<8x128xf32>
    %c6_i32 = arith.constant 6 : i32
    %390 = arith.addi %6, %c6_i32 : i32
    %391 = vector.broadcast %390 : i32 to vector<8x1xi32>
    %392 = arith.cmpi slt, %391, %3 : vector<8x1xi32>
    %393 = vector.shape_cast %392 : vector<8x1xi1> to vector<8x1xi1>
    %394 = vector.broadcast %393 : vector<8x1xi1> to vector<8x128xi1>
    %395 = arith.select %394, %389, %349 : vector<8x128xi1>, vector<8x128xf32>
    %c0_156 = arith.constant 0 : index
    %c0_157 = arith.constant 0 : index
    %396 = vector.load %arg9[%c0_156, %c0_157] : memref<8x128xf32, #tpu.memory_space<vmem>>, vector<8x128xf32>
    tpu.vector_store %arg9[%c0_156, %c0_157], %395 {strides = array<i32>} : memref<8x128xf32, #tpu.memory_space<vmem>>, vector<8x128xf32>,
    %397 = vector.shape_cast %392 : vector<8x1xi1> to vector<8x1xi1>
    %398 = vector.broadcast %397 : vector<8x1xi1> to vector<8x128xi1>
    %399 = arith.select %398, %387, %350 : vector<8x128xi1>, vector<8x128xf32>
    %c0_158 = arith.constant 0 : index
    %c0_159 = arith.constant 0 : index
    %400 = vector.load %arg10[%c0_158, %c0_159] : memref<8x128xf32, #tpu.memory_space<vmem>>, vector<8x128xf32>
    tpu.vector_store %arg10[%c0_158, %c0_159], %399 {strides = array<i32>} : memref<8x128xf32, #tpu.memory_space<vmem>>, vector<8x128xf32>,
    %cst_160 = arith.constant 0.000000e+00 : f32
    %401 = vector.shape_cast %392 : vector<8x1xi1> to vector<8x1xi1>
    %402 = vector.broadcast %401 : vector<8x1xi1> to vector<8x128xi1>
    %403 = vector.broadcast %cst_160 : f32 to vector<8x128xf32>
    %404 = arith.select %402, %389, %403 : vector<8x128xi1>, vector<8x128xf32>
    %c0_161 = arith.constant 0 : index
    %c768 = arith.constant 768 : index
    %405 = vector.load %arg6[%c0_161, %c768] : memref<8x1024xf32, #tpu.memory_space<vmem>>, vector<8x128xf32>
    tpu.vector_store %arg6[%c0_161, %c768], %404 {strides = array<i32>} : memref<8x1024xf32, #tpu.memory_space<vmem>>, vector<8x128xf32>,
    %c0_162 = arith.constant 0 : index
    %c0_163 = arith.constant 0 : index
    %406 = vector.load %arg9[%c0_162, %c0_163] : memref<8x128xf32, #tpu.memory_space<vmem>>, vector<8x128xf32>
    %c0_164 = arith.constant 0 : index
    %c0_165 = arith.constant 0 : index
    %407 = vector.load %arg10[%c0_164, %c0_165] : memref<8x128xf32, #tpu.memory_space<vmem>>, vector<8x128xf32>
    %408 = arith.truncf %406 : vector<8x128xf32> to vector<8x128xbf16>
    %cst_166 = arith.constant dense<0.000000e+00> : vector<8x512xf32>
    %409 = tpu.matmul %408, %5, %cst_166 {dimension_numbers = #tpu.dot_dimension_numbers<[1], [0], [0], [1], [0, 0, 1, 1], [], []>} : vector<8x128xbf16>, vector<128x512xbf16>, vector<8x512xf32> -> vector<8x512xf32>
    %c7 = arith.constant 7 : index
    %c0_167 = arith.constant 0 : index
    %c0_168 = arith.constant 0 : index
    %410 = vector.load %arg4[%c7, %c0_167, %c0_168] : memref<8x8x512xbf16, #tpu.memory_space<vmem>>, vector<1x8x512xbf16>
    %411 = vector.shape_cast %410 : vector<1x8x512xbf16> to vector<8x512xbf16>
    %412 = arith.extf %411 : vector<8x512xbf16> to vector<8x512xf32>
    %413 = arith.addf %409, %412 : vector<8x512xf32>
    %414 = vector.broadcast %4 : vector<1x512xf32> to vector<8x512xf32>
    %415 = arith.addf %413, %414 : vector<8x512xf32>
    %416 = vector.extract_strided_slice %415 {offsets = [0, 0], sizes = [8, 128], strides = [1, 1]} : vector<8x512xf32> to vector<8x128xf32>
    %cst_169 = arith.constant 5.000000e-01 : f32
    %417 = vector.broadcast %cst_169 : f32 to vector<8x128xf32>
    %418 = arith.mulf %417, %416 : vector<8x128xf32>
    %419 = math.tanh %418 : vector<8x128xf32>
    %cst_170 = arith.constant 5.000000e-01 : f32
    %420 = vector.broadcast %cst_170 : f32 to vector<8x128xf32>
    %421 = arith.mulf %420, %419 : vector<8x128xf32>
    %cst_171 = arith.constant 5.000000e-01 : f32
    %422 = vector.broadcast %cst_171 : f32 to vector<8x128xf32>
    %423 = arith.addf %421, %422 : vector<8x128xf32>
    %424 = vector.extract_strided_slice %415 {offsets = [0, 128], sizes = [8, 128], strides = [1, 1]} : vector<8x512xf32> to vector<8x128xf32>
    %cst_172 = arith.constant 5.000000e-01 : f32
    %425 = vector.broadcast %cst_172 : f32 to vector<8x128xf32>
    %426 = arith.mulf %425, %424 : vector<8x128xf32>
    %427 = math.tanh %426 : vector<8x128xf32>
    %cst_173 = arith.constant 5.000000e-01 : f32
    %428 = vector.broadcast %cst_173 : f32 to vector<8x128xf32>
    %429 = arith.mulf %428, %427 : vector<8x128xf32>
    %cst_174 = arith.constant 5.000000e-01 : f32
    %430 = vector.broadcast %cst_174 : f32 to vector<8x128xf32>
    %431 = arith.addf %429, %430 : vector<8x128xf32>
    %432 = vector.extract_strided_slice %415 {offsets = [0, 256], sizes = [8, 128], strides = [1, 1]} : vector<8x512xf32> to vector<8x128xf32>
    %433 = math.tanh %432 : vector<8x128xf32>
    %434 = vector.extract_strided_slice %415 {offsets = [0, 384], sizes = [8, 128], strides = [1, 1]} : vector<8x512xf32> to vector<8x128xf32>
    %cst_175 = arith.constant 5.000000e-01 : f32
    %435 = vector.broadcast %cst_175 : f32 to vector<8x128xf32>
    %436 = arith.mulf %435, %434 : vector<8x128xf32>
    %437 = math.tanh %436 : vector<8x128xf32>
    %cst_176 = arith.constant 5.000000e-01 : f32
    %438 = vector.broadcast %cst_176 : f32 to vector<8x128xf32>
    %439 = arith.mulf %438, %437 : vector<8x128xf32>
    %cst_177 = arith.constant 5.000000e-01 : f32
    %440 = vector.broadcast %cst_177 : f32 to vector<8x128xf32>
    %441 = arith.addf %439, %440 : vector<8x128xf32>
    %442 = arith.mulf %431, %407 : vector<8x128xf32>
    %443 = arith.mulf %423, %433 : vector<8x128xf32>
    %444 = arith.addf %442, %443 : vector<8x128xf32>
    %445 = math.tanh %444 : vector<8x128xf32>
    %446 = arith.mulf %441, %445 : vector<8x128xf32>
    %c7_i32 = arith.constant 7 : i32
    %447 = arith.addi %6, %c7_i32 : i32
    %448 = vector.broadcast %447 : i32 to vector<8x1xi32>
    %449 = arith.cmpi slt, %448, %3 : vector<8x1xi32>
    %450 = vector.shape_cast %449 : vector<8x1xi1> to vector<8x1xi1>
    %451 = vector.broadcast %450 : vector<8x1xi1> to vector<8x128xi1>
    %452 = arith.select %451, %446, %406 : vector<8x128xi1>, vector<8x128xf32>
    %c0_178 = arith.constant 0 : index
    %c0_179 = arith.constant 0 : index
    %453 = vector.load %arg9[%c0_178, %c0_179] : memref<8x128xf32, #tpu.memory_space<vmem>>, vector<8x128xf32>
    tpu.vector_store %arg9[%c0_178, %c0_179], %452 {strides = array<i32>} : memref<8x128xf32, #tpu.memory_space<vmem>>, vector<8x128xf32>,
    %454 = vector.shape_cast %449 : vector<8x1xi1> to vector<8x1xi1>
    %455 = vector.broadcast %454 : vector<8x1xi1> to vector<8x128xi1>
    %456 = arith.select %455, %444, %407 : vector<8x128xi1>, vector<8x128xf32>
    %c0_180 = arith.constant 0 : index
    %c0_181 = arith.constant 0 : index
    %457 = vector.load %arg10[%c0_180, %c0_181] : memref<8x128xf32, #tpu.memory_space<vmem>>, vector<8x128xf32>
    tpu.vector_store %arg10[%c0_180, %c0_181], %456 {strides = array<i32>} : memref<8x128xf32, #tpu.memory_space<vmem>>, vector<8x128xf32>,
    %cst_182 = arith.constant 0.000000e+00 : f32
    %458 = vector.shape_cast %449 : vector<8x1xi1> to vector<8x1xi1>
    %459 = vector.broadcast %458 : vector<8x1xi1> to vector<8x128xi1>
    %460 = vector.broadcast %cst_182 : f32 to vector<8x128xf32>
    %461 = arith.select %459, %446, %460 : vector<8x128xi1>, vector<8x128xf32>
    %c0_183 = arith.constant 0 : index
    %c896 = arith.constant 896 : index
    %462 = vector.load %arg6[%c0_183, %c896] : memref<8x1024xf32, #tpu.memory_space<vmem>>, vector<8x128xf32>
    tpu.vector_store %arg6[%c0_183, %c896], %461 {strides = array<i32>} : memref<8x1024xf32, #tpu.memory_space<vmem>>, vector<8x128xf32>,
    %c0_i32_184 = arith.constant 0 : i32
    %463 = arith.cmpi eq, %arg1, %c0_i32_184 : i32
    %464 = arith.extui %463 : i1 to i32
    %c0_i32_185 = arith.constant 0 : i32
    %465 = arith.cmpi ne, %464, %c0_i32_185 : i32
    scf.if %465 {
      %c0_186 = arith.constant 0 : index
      %c0_187 = arith.constant 0 : index
      %466 = vector.load %arg9[%c0_186, %c0_187] : memref<8x128xf32, #tpu.memory_space<vmem>>, vector<8x128xf32>
      %c0_188 = arith.constant 0 : index
      %c0_189 = arith.constant 0 : index
      %467 = vector.load %arg7[%c0_188, %c0_189] : memref<8x128xf32, #tpu.memory_space<vmem>>, vector<8x128xf32>
      tpu.vector_store %arg7[%c0_188, %c0_189], %466 {strides = array<i32>} : memref<8x128xf32, #tpu.memory_space<vmem>>, vector<8x128xf32>,
      %c0_190 = arith.constant 0 : index
      %c0_191 = arith.constant 0 : index
      %468 = vector.load %arg10[%c0_190, %c0_191] : memref<8x128xf32, #tpu.memory_space<vmem>>, vector<8x128xf32>
      %c0_192 = arith.constant 0 : index
      %c0_193 = arith.constant 0 : index
      %469 = vector.load %arg8[%c0_192, %c0_193] : memref<8x128xf32, #tpu.memory_space<vmem>>, vector<8x128xf32>
      tpu.vector_store %arg8[%c0_192, %c0_193], %468 {strides = array<i32>} : memref<8x128xf32, #tpu.memory_space<vmem>>, vector<8x128xf32>,
    } else {
    }
    return
  }
  func.func @transform_0(%arg0: i32, %arg1: i32) -> (i32, i32) {
    %c0_i32 = arith.constant 0 : i32
    %c0_i32_0 = arith.constant 0 : i32
    return %arg0, %c0_i32 : i32, i32
  }
  func.func @transform_1(%arg0: i32, %arg1: i32) -> (i32, i32) {
    %c0_i32 = arith.constant 0 : i32
    %c0_i32_0 = arith.constant 0 : i32
    %c0_i32_1 = arith.constant 0 : i32
    return %c0_i32, %c0_i32_0 : i32, i32
  }
  func.func @transform_2(%arg0: i32, %arg1: i32) -> (i32, i32, i32) {
    %c0_i32 = arith.constant 0 : i32
    %c0_i32_0 = arith.constant 0 : i32
    return %arg1, %arg0, %c0_i32 : i32, i32, i32
  }
  func.func @transform_3(%arg0: i32, %arg1: i32) -> (i32, i32) {
    %c0_i32 = arith.constant 0 : i32
    %c0_i32_0 = arith.constant 0 : i32
    %c0_i32_1 = arith.constant 0 : i32
    return %c0_i32, %c0_i32_0 : i32, i32
  }
  func.func @transform_4(%arg0: i32, %arg1: i32) -> (i32, i32) {
    %c0_i32 = arith.constant 0 : i32
    return %arg0, %arg1 : i32, i32
  }
  func.func @transform_5(%arg0: i32, %arg1: i32) -> (i32, i32) {
    %c0_i32 = arith.constant 0 : i32
    %c0_i32_0 = arith.constant 0 : i32
    return %arg0, %c0_i32 : i32, i32
  }
  func.func @transform_6(%arg0: i32, %arg1: i32) -> (i32, i32) {
    %c0_i32 = arith.constant 0 : i32
    %c0_i32_0 = arith.constant 0 : i32
    return %arg0, %c0_i32 : i32, i32
  }
}

</mosaic_0001>

<llo_original>
// kernel: tpu_custom_call.1
$region0: #{tpu_custom_call.1}
  #allocation0 [shape = 'u32[]', space=smem, size = 0x4, offset = 0x4, fixed_abs, tag = 'smem constant byte address 0x4 - core index']
  #allocation1 [shape = 'u32[72,128]{1,0:T(1,128)}', space=vmem, size = 0x9000, scoped, tag = 'internal scratch']
  #allocation2 [shape = 'f32[8,128]{1,0:T(8,128)}', space=vmem, size = 0x1000, scoped, tag = 'scratch operand']
  #allocation3 [shape = 'f32[8,128]{1,0:T(8,128)}', space=vmem, size = 0x1000, scoped, tag = 'scratch operand']
  %s0 = inlined_call_operand.vmem [shape: s32[8,1], index: 0, kind: input, shape index: {}]
  %s1 = inlined_call_operand.vmem [shape: f32[1,512], index: 1, kind: input, shape index: {}]
  %s2 = inlined_call_operand.hbm [shape: bf16[8,8,512], index: 2, kind: input, shape index: {}]
  %s3 = inlined_call_operand.hbm [shape: bf16[128,512], index: 3, kind: input, shape index: {}]
  %s4 = inlined_call_operand.hbm [shape: f32[8,1024], index: 4, kind: output, shape index: {0}]
  %s5 = inlined_call_operand.hbm [shape: f32[8,128], index: 5, kind: output, shape index: {1}]
  %s6 = inlined_call_operand.hbm [shape: f32[8,128], index: 6, kind: output, shape index: {2}]
  %7 = xla_tuple %s4, %s5, %s6
  %s8 = sld [smem:[#allocation0]]
  $region58: #{tpu_custom_call.1} parent=0
    _
  %s10 = ssub.s32 1, %s8
  %s11 = scalar_select 0, %s10, %s8
  $region1: #{tpu_custom_call.1} parent=0
    #allocation4 [shape = 'u8[65536]{0}', space=vmem, size = 0x10000, scoped, tag = 'input window, operand 2, single buffered']
    #allocation5 [shape = 's32[1]{0}', space=sflag, size = 0x4, scoped, tag = 'scoped memory for tpu_custom_call.1']
    #allocation6 [shape = 's32[1]{0}', space=sflag, size = 0x4, scoped, tag = 'scoped memory for tpu_custom_call.1']
    #allocation7 [shape = 'u8[131072]{0}', space=vmem, size = 0x20000, scoped, tag = 'input window, operand 3, single buffered']
    #allocation8 [shape = 's32[1]{0}', space=sflag, size = 0x4, scoped, tag = 'scoped memory for tpu_custom_call.1']
    #allocation9 [shape = 'u8[32768]{0}', space=vmem, size = 0x8000, scoped, tag = 'output window, operand 0, single buffered']
    #allocation10 [shape = 'u8[4096]{0}', space=vmem, size = 0x1000, scoped, tag = 'output window, operand 1, single buffered']
    #allocation11 [shape = 's32[1]{0}', space=sflag, size = 0x4, scoped, tag = 'scoped memory for tpu_custom_call.1']
    #allocation12 [shape = 'u8[4096]{0}', space=vmem, size = 0x1000, scoped, tag = 'output window, operand 2, single buffered']
    %12 = vsyncpa [#allocation5], 0
    %13 = vsyncpa [#allocation8], 0
    %14 = vsyncpa [#allocation6], 0
    %15 = vsyncpa [#allocation11], 0
    // Predicated region
    $region2: #{tpu_custom_call.1} parent=1 // pred_check
      _
    $region3: #{tpu_custom_call.1} parent=1 // pred_check_branch
      %17 = sbr.rel (0) target = $region5
    $region4: #{tpu_custom_call.1} parent=1 // pred_region
      _
    $region5: #{tpu_custom_call.1} parent=1 // pred_fallthru
      _
    // Predicated region
    $region6: #{tpu_custom_call.1} parent=1 // pred_check
      _
    $region7: #{tpu_custom_call.1} parent=1 // pred_check_branch
      %19 = sbr.rel (0) target = $region9
    $region8: #{tpu_custom_call.1} parent=1 // pred_region
      _
    $region9: #{tpu_custom_call.1} parent=1 // pred_fallthru
      _
    // Predicated region
    $region10: #{tpu_custom_call.1} parent=1 // pred_check
      _
    $region11: #{tpu_custom_call.1} parent=1 // pred_check_branch
      %21 = sbr.rel (0) target = $region13
    $region12: #{tpu_custom_call.1} parent=1 // pred_region
      %23 = vsyncadd [#allocation5], 0
      %s24 = sshll.u32 %s2, 4
      %s25 = int_to_ptr.hbm [resolvable:$true] %s24
      %s26 = sshll.u32 [#allocation4], 4
      %s27 = int_to_ptr.vmem [resolvable:$true] %s26
      %32 = dma.hbm_to_vmem [thread:$0]  %s25, 2048, %s27, [#allocation5], 256, 256, 16
    $region13: #{tpu_custom_call.1} parent=1 // pred_fallthru
      _
    // Predicated region
    $region14: #{tpu_custom_call.1} parent=1 // pred_check
      _
    $region15: #{tpu_custom_call.1} parent=1 // pred_check_branch
      %34 = sbr.rel (0) target = $region17
    $region16: #{tpu_custom_call.1} parent=1 // pred_region
      %36 = vsyncadd [#allocation8], 0
      %s37 = sshll.u32 %s3, 4
      %s38 = int_to_ptr.hbm [resolvable:$true] %s37
      %s39 = sshll.u32 [#allocation7], 4
      %s40 = int_to_ptr.vmem [resolvable:$true] %s39
      %45 = dma.hbm_to_vmem [thread:$0]  %s38, 4096, %s40, [#allocation8], 256, 256, 16
    $region17: #{tpu_custom_call.1} parent=1 // pred_fallthru
      _
    // Predicated region
    $region18: #{tpu_custom_call.1} parent=1 // pred_check
      _
    $region19: #{tpu_custom_call.1} parent=1 // pred_check_branch
      %47 = sbr.rel (0) target = $region21
    $region20: #{tpu_custom_call.1} parent=1 // pred_region
      %49 = dma.done [#allocation5], 2048
    $region21: #{tpu_custom_call.1} parent=1 // pred_fallthru
      _
    // Predicated region
    $region22: #{tpu_custom_call.1} parent=1 // pred_check
      _
    $region23: #{tpu_custom_call.1} parent=1 // pred_check_branch
      %51 = sbr.rel (0) target = $region25
    $region24: #{tpu_custom_call.1} parent=1 // pred_region
      %53 = dma.done [#allocation8], 4096
    $region25: #{tpu_custom_call.1} parent=1 // pred_fallthru
      _
    %p54 = scmp.eq.s32.totalorder 0, 0
    // Predicated region
    $region26: #{tpu_custom_call.1} parent=1 // pred_check
      %p55 = pneg %p54
    $region27: #{tpu_custom_call.1} parent=1 // pred_check_branch
      %57 = sbr.rel (%p55) target = $region29
    $region28: #{tpu_custom_call.1} parent=1 // pred_region
      %58 = vst [vmem:[#allocation2] sm:$0xff] 0.0
      %59 = vst [vmem:[#allocation3] sm:$0xff] 0.0
    $region29: #{tpu_custom_call.1} parent=1 // pred_fallthru
      _
    %v60 = vld [vmem:[%s0] sm:$0xff]
    %v61 = vld [vmem:[%s1] sm:$0xf]
    %v62 = vld [vmem:[#allocation7] sm:$0xff]
    %v63 = vld [vmem:[#allocation7 + $0x8] sm:$0xff]
    %v64 = vld [vmem:[#allocation7 + $0x10] sm:$0xff]
    %v65 = vld [vmem:[#allocation7 + $0x18] sm:$0xff]
    %v66 = vld [vmem:[#allocation7 + $0x20] sm:$0xff]
    %v67 = vld [vmem:[#allocation7 + $0x28] sm:$0xff]
    %v68 = vld [vmem:[#allocation7 + $0x30] sm:$0xff]
    %v69 = vld [vmem:[#allocation7 + $0x38] sm:$0xff]
    %v70 = vld [vmem:[#allocation7 + $0x40] sm:$0xff]
    %v71 = vld [vmem:[#allocation7 + $0x48] sm:$0xff]
    %v72 = vld [vmem:[#allocation7 + $0x50] sm:$0xff]
    %v73 = vld [vmem:[#allocation7 + $0x58] sm:$0xff]
    %v74 = vld [vmem:[#allocation7 + $0x60] sm:$0xff]
    %v75 = vld [vmem:[#allocation7 + $0x68] sm:$0xff]
    %v76 = vld [vmem:[#allocation7 + $0x70] sm:$0xff]
    %v77 = vld [vmem:[#allocation7 + $0x78] sm:$0xff]
    %v78 = vld [vmem:[#allocation7 + $0x80] sm:$0xff]
    %v79 = vld [vmem:[#allocation7 + $0x88] sm:$0xff]
    %v80 = vld [vmem:[#allocation7 + $0x90] sm:$0xff]
    %v81 = vld [vmem:[#allocation7 + $0x98] sm:$0xff]
    %v82 = vld [vmem:[#allocation7 + $0xa0] sm:$0xff]
    %v83 = vld [vmem:[#allocation7 + $0xa8] sm:$0xff]
    %v84 = vld [vmem:[#allocation7 + $0xb0] sm:$0xff]
    %v85 = vld [vmem:[#allocation7 + $0xb8] sm:$0xff]
    %v86 = vld [vmem:[#allocation7 + $0xc0] sm:$0xff]
    %v87 = vld [vmem:[#allocation7 + $0xc8] sm:$0xff]
    %v88 = vld [vmem:[#allocation7 + $0xd0] sm:$0xff]
    %v89 = vld [vmem:[#allocation7 + $0xd8] sm:$0xff]
    %v90 = vld [vmem:[#allocation7 + $0xe0] sm:$0xff]
    %v91 = vld [vmem:[#allocation7 + $0xe8] sm:$0xff]
    %v92 = vld [vmem:[#allocation7 + $0xf0] sm:$0xff]
    %v93 = vld [vmem:[#allocation7 + $0xf8] sm:$0xff]
    %s94 = smul.u32 0, 8
    %v95 = vld [vmem:[#allocation2] sm:$0xff]
    %v96 = vld [vmem:[#allocation3] sm:$0xff]
    %v97 = vpack.c.bf16 %v95, %v95
    %v98 = vld [vmem:[#allocation4] sm:$0xff]
    %v99 = vld [vmem:[#allocation4 + $0x8] sm:$0xff]
    %v100 = vunpack.c.l.bf16 %v98
    %v101 = vunpack.c.h.bf16 %v98
    %v102 = vunpack.c.l.bf16 %v99
    %v103 = vunpack.c.h.bf16 %v99
    %v136 = vunpack.c.l.b16 %v62
    %v137 = vunpack.c.h.b16 %v62
    %v138 = vunpack.c.l.b16 %v63
    %v139 = vunpack.c.h.b16 %v63
    %v140 = vunpack.c.l.b16 %v64
    %v141 = vunpack.c.h.b16 %v64
    %v142 = vunpack.c.l.b16 %v65
    %v143 = vunpack.c.h.b16 %v65
    %v144 = vunpack.c.l.b16 %v66
    %v145 = vunpack.c.h.b16 %v66
    %v146 = vunpack.c.l.b16 %v67
    %v147 = vunpack.c.h.b16 %v67
    %v148 = vunpack.c.l.b16 %v68
    %v149 = vunpack.c.h.b16 %v68
    %v150 = vunpack.c.l.b16 %v69
    %v151 = vunpack.c.h.b16 %v69
    %v152 = vunpack.c.l.b16 %v70
    %v153 = vunpack.c.h.b16 %v70
    %v154 = vunpack.c.l.b16 %v71
    %v155 = vunpack.c.h.b16 %v71
    %v156 = vunpack.c.l.b16 %v72
    %v157 = vunpack.c.h.b16 %v72
    %v158 = vunpack.c.l.b16 %v73
    %v159 = vunpack.c.h.b16 %v73
    %v160 = vunpack.c.l.b16 %v74
    %v161 = vunpack.c.h.b16 %v74
    %v162 = vunpack.c.l.b16 %v75
    %v163 = vunpack.c.h.b16 %v75
    %v164 = vunpack.c.l.b16 %v76
    %v165 = vunpack.c.h.b16 %v76
    %v166 = vunpack.c.l.b16 %v77
    %v167 = vunpack.c.h.b16 %v77
    %v168 = vunpack.c.l.b16 %v78
    %v169 = vunpack.c.h.b16 %v78
    %v170 = vunpack.c.l.b16 %v79
    %v171 = vunpack.c.h.b16 %v79
    %v172 = vunpack.c.l.b16 %v80
    %v173 = vunpack.c.h.b16 %v80
    %v174 = vunpack.c.l.b16 %v81
    %v175 = vunpack.c.h.b16 %v81
    %v176 = vunpack.c.l.b16 %v82
    %v177 = vunpack.c.h.b16 %v82
    %v178 = vunpack.c.l.b16 %v83
    %v179 = vunpack.c.h.b16 %v83
    %v180 = vunpack.c.l.b16 %v84
    %v181 = vunpack.c.h.b16 %v84
    %v182 = vunpack.c.l.b16 %v85
    %v183 = vunpack.c.h.b16 %v85
    %v184 = vunpack.c.l.b16 %v86
    %v185 = vunpack.c.h.b16 %v86
    %v186 = vunpack.c.l.b16 %v87
    %v187 = vunpack.c.h.b16 %v87
    %v188 = vunpack.c.l.b16 %v88
    %v189 = vunpack.c.h.b16 %v88
    %v190 = vunpack.c.l.b16 %v89
    %v191 = vunpack.c.h.b16 %v89
    %v192 = vunpack.c.l.b16 %v90
    %v193 = vunpack.c.h.b16 %v90
    %v194 = vunpack.c.l.b16 %v91
    %v195 = vunpack.c.h.b16 %v91
    %v196 = vunpack.c.l.b16 %v92
    %v197 = vunpack.c.h.b16 %v92
    %v198 = vunpack.c.l.b16 %v93
    %v199 = vunpack.c.h.b16 %v93
    %v200 = vpack.c.b16 %v140, %v136
    %v201 = vpack.c.b16 %v141, %v137
    %v202 = vpack.c.b16 %v142, %v138
    %v203 = vpack.c.b16 %v143, %v139
    %v204 = vpack.c.b16 %v148, %v144
    %v205 = vpack.c.b16 %v149, %v145
    %v206 = vpack.c.b16 %v150, %v146
    %v207 = vpack.c.b16 %v151, %v147
    %v208 = vpack.c.b16 %v156, %v152
    %v209 = vpack.c.b16 %v157, %v153
    %v210 = vpack.c.b16 %v158, %v154
    %v211 = vpack.c.b16 %v159, %v155
    %v212 = vpack.c.b16 %v164, %v160
    %v213 = vpack.c.b16 %v165, %v161
    %v214 = vpack.c.b16 %v166, %v162
    %v215 = vpack.c.b16 %v167, %v163
    %v216 = vpack.c.b16 %v172, %v168
    %v217 = vpack.c.b16 %v173, %v169
    %v218 = vpack.c.b16 %v174, %v170
    %v219 = vpack.c.b16 %v175, %v171
    %v220 = vpack.c.b16 %v180, %v176
    %v221 = vpack.c.b16 %v181, %v177
    %v222 = vpack.c.b16 %v182, %v178
    %v223 = vpack.c.b16 %v183, %v179
    %v224 = vpack.c.b16 %v188, %v184
    %v225 = vpack.c.b16 %v189, %v185
    %v226 = vpack.c.b16 %v190, %v186
    %v227 = vpack.c.b16 %v191, %v187
    %v228 = vpack.c.b16 %v196, %v192
    %v229 = vpack.c.b16 %v197, %v193
    %v230 = vpack.c.b16 %v198, %v194
    %v231 = vpack.c.b16 %v199, %v195
    %264 = vmatpush.bf16.msra.mxu0 %v228
    %265 = vmatpush.bf16.msra.mxu0 %v224
    %266 = vmatpush.bf16.msra.mxu0 %v220
    %267 = vmatpush.bf16.msra.mxu0 %v216
    %268 = vmatpush.bf16.msra.mxu0 %v212
    %269 = vmatpush.bf16.msra.mxu0 %v208
    %270 = vmatpush.bf16.msra.mxu0 %v204
    %271 = vmatpush.bf16.msra.mxu0 %v200
    %272 = vmatmul.bf16.gmra.mxu0 %v97
    %v273 = vpop.f32.mrf.mxu0
    %v274 = vadd.f32 %v100, %v273
    %v275 = vpop.f32.mrf.mxu0
    %276 = vdwg.mxu0
    %277 = vmatpush.bf16.msra.mxu0 %v229
    %278 = vmatpush.bf16.msra.mxu0 %v225
    %279 = vmatpush.bf16.msra.mxu0 %v221
    %280 = vmatpush.bf16.msra.mxu0 %v217
    %281 = vmatpush.bf16.msra.mxu0 %v213
    %282 = vmatpush.bf16.msra.mxu0 %v209
    %283 = vmatpush.bf16.msra.mxu0 %v205
    %284 = vmatpush.bf16.msra.mxu0 %v201
    %285 = vmatmul.bf16.gmra.mxu0 %v97
    %v286 = vpop.f32.mrf.mxu0
    %v287 = vadd.f32 %v101, %v286
    %v288 = vpop.f32.mrf.mxu0
    %289 = vdwg.mxu0
    %290 = vmatpush.bf16.msra.mxu0 %v230
    %291 = vmatpush.bf16.msra.mxu0 %v226
    %292 = vmatpush.bf16.msra.mxu0 %v222
    %293 = vmatpush.bf16.msra.mxu0 %v218
    %294 = vmatpush.bf16.msra.mxu0 %v214
    %295 = vmatpush.bf16.msra.mxu0 %v210
    %296 = vmatpush.bf16.msra.mxu0 %v206
    %297 = vmatpush.bf16.msra.mxu0 %v202
    %298 = vmatmul.bf16.gmra.mxu0 %v97
    %v299 = vpop.f32.mrf.mxu0
    %v300 = vadd.f32 %v102, %v299
    %v301 = vpop.f32.mrf.mxu0
    %302 = vdwg.mxu0
    %303 = vmatpush.bf16.msra.mxu0 %v231
    %304 = vmatpush.bf16.msra.mxu0 %v227
    %305 = vmatpush.bf16.msra.mxu0 %v223
    %306 = vmatpush.bf16.msra.mxu0 %v219
    %307 = vmatpush.bf16.msra.mxu0 %v215
    %308 = vmatpush.bf16.msra.mxu0 %v211
    %309 = vmatpush.bf16.msra.mxu0 %v207
    %310 = vmatpush.bf16.msra.mxu0 %v203
    %311 = vmatmul.bf16.gmra.mxu0 %v97
    %v312 = vpop.f32.mrf.mxu0
    %v313 = vadd.f32 %v103, %v312
    %v314 = vpop.f32.mrf.mxu0
    %315 = vdwg.mxu0
    %v317 = vperm.slane %v61, 0
    %v318 = vperm.slane %v61, 1
    %v319 = vperm.slane %v61, 2
    %v320 = vperm.slane %v61, 3
    %v325 = vadd.f32 %v274, %v317
    %v326 = vadd.f32 %v287, %v318
    %v327 = vadd.f32 %v300, %v319
    %v328 = vadd.f32 %v313, %v320
    %v329 = vmul.f32 %v325, 0.5
    %v330 = vtanh.pop %v329
    %v331 = vmul.f32 %v330, 0.5
    %v332 = vadd.f32 %v331, 0.5
    %v333 = vmul.f32 %v326, 0.5
    %v334 = vtanh.pop %v333
    %v335 = vmul.f32 %v334, 0.5
    %v336 = vadd.f32 %v335, 0.5
    %v337 = vtanh.pop %v327
    %v338 = vmul.f32 %v328, 0.5
    %v339 = vtanh.pop %v338
    %v340 = vmul.f32 %v339, 0.5
    %v341 = vadd.f32 %v340, 0.5
    %v342 = vmul.f32 %v336, %v96
    %v343 = vmul.f32 %v332, %v337
    %v344 = vadd.f32 %v342, %v343
    %v345 = vtanh.pop %v344
    %v346 = vmul.f32 %v341, %v345
    %v347 = vstv %s94
    %vm348 = vcmp.lt.s32.totalorder %v347, %v60
    %v349 = vsel %vm348, 1, 0
    %350 = vset.pattern.permute.xlu0 0
    %351 = vperm.xlu0 %350, %v349
    %v352 = vpop.permute.xlu0 %351
    %vm353 = vcmp.eq.s32.totalorder %v352, 1
    %v354 = vsel %vm353, %v346, %v95
    %355 = vst [vmem:[#allocation2] sm:$0xff] %v354
    %v356 = vsel %vm353, %v344, %v96
    %357 = vst [vmem:[#allocation3] sm:$0xff] %v356
    %v358 = vsel %vm353, %v346, 0.0
    %359 = vst [vmem:[#allocation9] sm:$0xff] %v358
    %v360 = vld [vmem:[#allocation2] sm:$0xff]
    %v361 = vld [vmem:[#allocation3] sm:$0xff]
    %v362 = vpack.c.bf16 %v360, %v360
    %s363 = scalar_lea.vmem [#allocation4], 16
    %v364 = vld [vmem:[%s363] sm:$0xff]
    %v365 = vld [vmem:[%s363 + $0x8] sm:$0xff]
    %v366 = vunpack.c.l.bf16 %v364
    %v367 = vunpack.c.h.bf16 %v364
    %v368 = vunpack.c.l.bf16 %v365
    %v369 = vunpack.c.h.bf16 %v365
    %370 = vmatpush.bf16.msra.mxu0 %v228
    %371 = vmatpush.bf16.msra.mxu0 %v224
    %372 = vmatpush.bf16.msra.mxu0 %v220
    %373 = vmatpush.bf16.msra.mxu0 %v216
    %374 = vmatpush.bf16.msra.mxu0 %v212
    %375 = vmatpush.bf16.msra.mxu0 %v208
    %376 = vmatpush.bf16.msra.mxu0 %v204
    %377 = vmatpush.bf16.msra.mxu0 %v200
    %378 = vmatmul.bf16.gmra.mxu0 %v362
    %v379 = vpop.f32.mrf.mxu0
    %v380 = vadd.f32 %v366, %v379
    %v381 = vpop.f32.mrf.mxu0
    %382 = vdwg.mxu0
    %383 = vmatpush.bf16.msra.mxu0 %v229
    %384 = vmatpush.bf16.msra.mxu0 %v225
    %385 = vmatpush.bf16.msra.mxu0 %v221
    %386 = vmatpush.bf16.msra.mxu0 %v217
    %387 = vmatpush.bf16.msra.mxu0 %v213
    %388 = vmatpush.bf16.msra.mxu0 %v209
    %389 = vmatpush.bf16.msra.mxu0 %v205
    %390 = vmatpush.bf16.msra.mxu0 %v201
    %391 = vmatmul.bf16.gmra.mxu0 %v362
    %v392 = vpop.f32.mrf.mxu0
    %v393 = vadd.f32 %v367, %v392
    %v394 = vpop.f32.mrf.mxu0
    %395 = vdwg.mxu0
    %396 = vmatpush.bf16.msra.mxu0 %v230
    %397 = vmatpush.bf16.msra.mxu0 %v226
    %398 = vmatpush.bf16.msra.mxu0 %v222
    %399 = vmatpush.bf16.msra.mxu0 %v218
    %400 = vmatpush.bf16.msra.mxu0 %v214
    %401 = vmatpush.bf16.msra.mxu0 %v210
    %402 = vmatpush.bf16.msra.mxu0 %v206
    %403 = vmatpush.bf16.msra.mxu0 %v202
    %404 = vmatmul.bf16.gmra.mxu0 %v362
    %v405 = vpop.f32.mrf.mxu0
    %v406 = vadd.f32 %v368, %v405
    %v407 = vpop.f32.mrf.mxu0
    %408 = vdwg.mxu0
    %409 = vmatpush.bf16.msra.mxu0 %v231
    %410 = vmatpush.bf16.msra.mxu0 %v227
    %411 = vmatpush.bf16.msra.mxu0 %v223
    %412 = vmatpush.bf16.msra.mxu0 %v219
    %413 = vmatpush.bf16.msra.mxu0 %v215
    %414 = vmatpush.bf16.msra.mxu0 %v211
    %415 = vmatpush.bf16.msra.mxu0 %v207
    %416 = vmatpush.bf16.msra.mxu0 %v203
    %417 = vmatmul.bf16.gmra.mxu0 %v362
    %v418 = vpop.f32.mrf.mxu0
    %v419 = vadd.f32 %v369, %v418
    %v420 = vpop.f32.mrf.mxu0
    %421 = vdwg.mxu0
    %v422 = vadd.f32 %v380, %v317
    %v423 = vadd.f32 %v393, %v318
    %v424 = vadd.f32 %v406, %v319
    %v425 = vadd.f32 %v419, %v320
    %v426 = vmul.f32 %v422, 0.5
    %v427 = vtanh.pop %v426
    %v428 = vmul.f32 %v427, 0.5
    %v429 = vadd.f32 %v428, 0.5
    %v430 = vmul.f32 %v423, 0.5
    %v431 = vtanh.pop %v430
    %v432 = vmul.f32 %v431, 0.5
    %v433 = vadd.f32 %v432, 0.5
    %v434 = vtanh.pop %v424
    %v435 = vmul.f32 %v425, 0.5
    %v436 = vtanh.pop %v435
    %v437 = vmul.f32 %v436, 0.5
    %v438 = vadd.f32 %v437, 0.5
    %v439 = vmul.f32 %v433, %v361
    %v440 = vmul.f32 %v429, %v434
    %v441 = vadd.f32 %v439, %v440
    %v442 = vtanh.pop %v441
    %v443 = vmul.f32 %v438, %v442
    %s444 = sadd.s32 %s94, 1
    %v445 = vstv %s444
    %vm446 = vcmp.lt.s32.totalorder %v445, %v60
    %v447 = vsel %vm446, 1, 0
    %448 = vset.pattern.permute.xlu0 0
    %449 = vperm.xlu0 %448, %v447
    %v450 = vpop.permute.xlu0 %449
    %vm451 = vcmp.eq.s32.totalorder %v450, 1
    %v452 = vsel %vm451, %v443, %v360
    %453 = vst [vmem:[#allocation2] sm:$0xff] %v452
    %v454 = vsel %vm451, %v441, %v361
    %455 = vst [vmem:[#allocation3] sm:$0xff] %v454
    %v456 = vsel %vm451, %v443, 0.0
    %457 = vst [vmem:[#allocation9 + $0x8] sm:$0xff] %v456
    %v458 = vld [vmem:[#allocation2] sm:$0xff]
    %v459 = vld [vmem:[#allocation3] sm:$0xff]
    %v460 = vpack.c.bf16 %v458, %v458
    %s461 = scalar_lea.vmem [#allocation4], 32
    %v462 = vld [vmem:[%s461] sm:$0xff]
    %v463 = vld [vmem:[%s461 + $0x8] sm:$0xff]
    %v464 = vunpack.c.l.bf16 %v462
    %v465 = vunpack.c.h.bf16 %v462
    %v466 = vunpack.c.l.bf16 %v463
    %v467 = vunpack.c.h.bf16 %v463
    %468 = vmatpush.bf16.msra.mxu0 %v228
    %469 = vmatpush.bf16.msra.mxu0 %v224
    %470 = vmatpush.bf16.msra.mxu0 %v220
    %471 = vmatpush.bf16.msra.mxu0 %v216
    %472 = vmatpush.bf16.msra.mxu0 %v212
    %473 = vmatpush.bf16.msra.mxu0 %v208
    %474 = vmatpush.bf16.msra.mxu0 %v204
    %475 = vmatpush.bf16.msra.mxu0 %v200
    %476 = vmatmul.bf16.gmra.mxu0 %v460
    %v477 = vpop.f32.mrf.mxu0
    %v478 = vadd.f32 %v464, %v477
    %v479 = vpop.f32.mrf.mxu0
    %480 = vdwg.mxu0
    %481 = vmatpush.bf16.msra.mxu0 %v229
    %482 = vmatpush.bf16.msra.mxu0 %v225
    %483 = vmatpush.bf16.msra.mxu0 %v221
    %484 = vmatpush.bf16.msra.mxu0 %v217
    %485 = vmatpush.bf16.msra.mxu0 %v213
    %486 = vmatpush.bf16.msra.mxu0 %v209
    %487 = vmatpush.bf16.msra.mxu0 %v205
    %488 = vmatpush.bf16.msra.mxu0 %v201
    %489 = vmatmul.bf16.gmra.mxu0 %v460
    %v490 = vpop.f32.mrf.mxu0
    %v491 = vadd.f32 %v465, %v490
    %v492 = vpop.f32.mrf.mxu0
    %493 = vdwg.mxu0
    %494 = vmatpush.bf16.msra.mxu0 %v230
    %495 = vmatpush.bf16.msra.mxu0 %v226
    %496 = vmatpush.bf16.msra.mxu0 %v222
    %497 = vmatpush.bf16.msra.mxu0 %v218
    %498 = vmatpush.bf16.msra.mxu0 %v214
    %499 = vmatpush.bf16.msra.mxu0 %v210
    %500 = vmatpush.bf16.msra.mxu0 %v206
    %501 = vmatpush.bf16.msra.mxu0 %v202
    %502 = vmatmul.bf16.gmra.mxu0 %v460
    %v503 = vpop.f32.mrf.mxu0
    %v504 = vadd.f32 %v466, %v503
    %v505 = vpop.f32.mrf.mxu0
    %506 = vdwg.mxu0
    %507 = vmatpush.bf16.msra.mxu0 %v231
    %508 = vmatpush.bf16.msra.mxu0 %v227
    %509 = vmatpush.bf16.msra.mxu0 %v223
    %510 = vmatpush.bf16.msra.mxu0 %v219
    %511 = vmatpush.bf16.msra.mxu0 %v215
    %512 = vmatpush.bf16.msra.mxu0 %v211
    %513 = vmatpush.bf16.msra.mxu0 %v207
    %514 = vmatpush.bf16.msra.mxu0 %v203
    %515 = vmatmul.bf16.gmra.mxu0 %v460
    %v516 = vpop.f32.mrf.mxu0
    %v517 = vadd.f32 %v467, %v516
    %v518 = vpop.f32.mrf.mxu0
    %519 = vdwg.mxu0
    %v520 = vadd.f32 %v478, %v317
    %v521 = vadd.f32 %v491, %v318
    %v522 = vadd.f32 %v504, %v319
    %v523 = vadd.f32 %v517, %v320
    %v524 = vmul.f32 %v520, 0.5
    %v525 = vtanh.pop %v524
    %v526 = vmul.f32 %v525, 0.5
    %v527 = vadd.f32 %v526, 0.5
    %v528 = vmul.f32 %v521, 0.5
    %v529 = vtanh.pop %v528
    %v530 = vmul.f32 %v529, 0.5
    %v531 = vadd.f32 %v530, 0.5
    %v532 = vtanh.pop %v522
    %v533 = vmul.f32 %v523, 0.5
    %v534 = vtanh.pop %v533
    %v535 = vmul.f32 %v534, 0.5
    %v536 = vadd.f32 %v535, 0.5
    %v537 = vmul.f32 %v531, %v459
    %v538 = vmul.f32 %v527, %v532
    %v539 = vadd.f32 %v537, %v538
    %v540 = vtanh.pop %v539
    %v541 = vmul.f32 %v536, %v540
    %s542 = sadd.s32 %s94, 2
    %v543 = vstv %s542
    %vm544 = vcmp.lt.s32.totalorder %v543, %v60
    %v545 = vsel %vm544, 1, 0
    %546 = vset.pattern.permute.xlu0 0
    %547 = vperm.xlu0 %546, %v545
    %v548 = vpop.permute.xlu0 %547
    %vm549 = vcmp.eq.s32.totalorder %v548, 1
    %v550 = vsel %vm549, %v541, %v458
    %551 = vst [vmem:[#allocation2] sm:$0xff] %v550
    %v552 = vsel %vm549, %v539, %v459
    %553 = vst [vmem:[#allocation3] sm:$0xff] %v552
    %v554 = vsel %vm549, %v541, 0.0
    %555 = vst [vmem:[#allocation9 + $0x10] sm:$0xff] %v554
    %v556 = vld [vmem:[#allocation2] sm:$0xff]
    %v557 = vld [vmem:[#allocation3] sm:$0xff]
    %v558 = vpack.c.bf16 %v556, %v556
    %s559 = scalar_lea.vmem [#allocation4], 48
    %v560 = vld [vmem:[%s559] sm:$0xff]
    %v561 = vld [vmem:[%s559 + $0x8] sm:$0xff]
    %v562 = vunpack.c.l.bf16 %v560
    %v563 = vunpack.c.h.bf16 %v560
    %v564 = vunpack.c.l.bf16 %v561
    %v565 = vunpack.c.h.bf16 %v561
    %566 = vmatpush.bf16.msra.mxu0 %v228
    %567 = vmatpush.bf16.msra.mxu0 %v224
    %568 = vmatpush.bf16.msra.mxu0 %v220
    %569 = vmatpush.bf16.msra.mxu0 %v216
    %570 = vmatpush.bf16.msra.mxu0 %v212
    %571 = vmatpush.bf16.msra.mxu0 %v208
    %572 = vmatpush.bf16.msra.mxu0 %v204
    %573 = vmatpush.bf16.msra.mxu0 %v200
    %574 = vmatmul.bf16.gmra.mxu0 %v558
    %v575 = vpop.f32.mrf.mxu0
    %v576 = vadd.f32 %v562, %v575
    %v577 = vpop.f32.mrf.mxu0
    %578 = vdwg.mxu0
    %579 = vmatpush.bf16.msra.mxu0 %v229
    %580 = vmatpush.bf16.msra.mxu0 %v225
    %581 = vmatpush.bf16.msra.mxu0 %v221
    %582 = vmatpush.bf16.msra.mxu0 %v217
    %583 = vmatpush.bf16.msra.mxu0 %v213
    %584 = vmatpush.bf16.msra.mxu0 %v209
    %585 = vmatpush.bf16.msra.mxu0 %v205
    %586 = vmatpush.bf16.msra.mxu0 %v201
    %587 = vmatmul.bf16.gmra.mxu0 %v558
    %v588 = vpop.f32.mrf.mxu0
    %v589 = vadd.f32 %v563, %v588
    %v590 = vpop.f32.mrf.mxu0
    %591 = vdwg.mxu0
    %592 = vmatpush.bf16.msra.mxu0 %v230
    %593 = vmatpush.bf16.msra.mxu0 %v226
    %594 = vmatpush.bf16.msra.mxu0 %v222
    %595 = vmatpush.bf16.msra.mxu0 %v218
    %596 = vmatpush.bf16.msra.mxu0 %v214
    %597 = vmatpush.bf16.msra.mxu0 %v210
    %598 = vmatpush.bf16.msra.mxu0 %v206
    %599 = vmatpush.bf16.msra.mxu0 %v202
    %600 = vmatmul.bf16.gmra.mxu0 %v558
    %v601 = vpop.f32.mrf.mxu0
    %v602 = vadd.f32 %v564, %v601
    %v603 = vpop.f32.mrf.mxu0
    %604 = vdwg.mxu0
    %605 = vmatpush.bf16.msra.mxu0 %v231
    %606 = vmatpush.bf16.msra.mxu0 %v227
    %607 = vmatpush.bf16.msra.mxu0 %v223
    %608 = vmatpush.bf16.msra.mxu0 %v219
    %609 = vmatpush.bf16.msra.mxu0 %v215
    %610 = vmatpush.bf16.msra.mxu0 %v211
    %611 = vmatpush.bf16.msra.mxu0 %v207
    %612 = vmatpush.bf16.msra.mxu0 %v203
    %613 = vmatmul.bf16.gmra.mxu0 %v558
    %v614 = vpop.f32.mrf.mxu0
    %v615 = vadd.f32 %v565, %v614
    %v616 = vpop.f32.mrf.mxu0
    %617 = vdwg.mxu0
    %v618 = vadd.f32 %v576, %v317
    %v619 = vadd.f32 %v589, %v318
    %v620 = vadd.f32 %v602, %v319
    %v621 = vadd.f32 %v615, %v320
    %v622 = vmul.f32 %v618, 0.5
    %v623 = vtanh.pop %v622
    %v624 = vmul.f32 %v623, 0.5
    %v625 = vadd.f32 %v624, 0.5
    %v626 = vmul.f32 %v619, 0.5
    %v627 = vtanh.pop %v626
    %v628 = vmul.f32 %v627, 0.5
    %v629 = vadd.f32 %v628, 0.5
    %v630 = vtanh.pop %v620
    %v631 = vmul.f32 %v621, 0.5
    %v632 = vtanh.pop %v631
    %v633 = vmul.f32 %v632, 0.5
    %v634 = vadd.f32 %v633, 0.5
    %v635 = vmul.f32 %v629, %v557
    %v636 = vmul.f32 %v625, %v630
    %v637 = vadd.f32 %v635, %v636
    %v638 = vtanh.pop %v637
    %v639 = vmul.f32 %v634, %v638
    %s640 = sadd.s32 %s94, 3
    %v641 = vstv %s640
    %vm642 = vcmp.lt.s32.totalorder %v641, %v60
    %v643 = vsel %vm642, 1, 0
    %644 = vset.pattern.permute.xlu0 0
    %645 = vperm.xlu0 %644, %v643
    %v646 = vpop.permute.xlu0 %645
    %vm647 = vcmp.eq.s32.totalorder %v646, 1
    %v648 = vsel %vm647, %v639, %v556
    %649 = vst [vmem:[#allocation2] sm:$0xff] %v648
    %v650 = vsel %vm647, %v637, %v557
    %651 = vst [vmem:[#allocation3] sm:$0xff] %v650
    %v652 = vsel %vm647, %v639, 0.0
    %653 = vst [vmem:[#allocation9 + $0x18] sm:$0xff] %v652
    %v654 = vld [vmem:[#allocation2] sm:$0xff]
    %v655 = vld [vmem:[#allocation3] sm:$0xff]
    %v656 = vpack.c.bf16 %v654, %v654
    %s657 = scalar_lea.vmem [#allocation4], 64
    %v658 = vld [vmem:[%s657] sm:$0xff]
    %v659 = vld [vmem:[%s657 + $0x8] sm:$0xff]
    %v660 = vunpack.c.l.bf16 %v658
    %v661 = vunpack.c.h.bf16 %v658
    %v662 = vunpack.c.l.bf16 %v659
    %v663 = vunpack.c.h.bf16 %v659
    %664 = vmatpush.bf16.msra.mxu0 %v228
    %665 = vmatpush.bf16.msra.mxu0 %v224
    %666 = vmatpush.bf16.msra.mxu0 %v220
    %667 = vmatpush.bf16.msra.mxu0 %v216
    %668 = vmatpush.bf16.msra.mxu0 %v212
    %669 = vmatpush.bf16.msra.mxu0 %v208
    %670 = vmatpush.bf16.msra.mxu0 %v204
    %671 = vmatpush.bf16.msra.mxu0 %v200
    %672 = vmatmul.bf16.gmra.mxu0 %v656
    %v673 = vpop.f32.mrf.mxu0
    %v674 = vadd.f32 %v660, %v673
    %v675 = vpop.f32.mrf.mxu0
    %676 = vdwg.mxu0
    %677 = vmatpush.bf16.msra.mxu0 %v229
    %678 = vmatpush.bf16.msra.mxu0 %v225
    %679 = vmatpush.bf16.msra.mxu0 %v221
    %680 = vmatpush.bf16.msra.mxu0 %v217
    %681 = vmatpush.bf16.msra.mxu0 %v213
    %682 = vmatpush.bf16.msra.mxu0 %v209
    %683 = vmatpush.bf16.msra.mxu0 %v205
    %684 = vmatpush.bf16.msra.mxu0 %v201
    %685 = vmatmul.bf16.gmra.mxu0 %v656
    %v686 = vpop.f32.mrf.mxu0
    %v687 = vadd.f32 %v661, %v686
    %v688 = vpop.f32.mrf.mxu0
    %689 = vdwg.mxu0
    %690 = vmatpush.bf16.msra.mxu0 %v230
    %691 = vmatpush.bf16.msra.mxu0 %v226
    %692 = vmatpush.bf16.msra.mxu0 %v222
    %693 = vmatpush.bf16.msra.mxu0 %v218
    %694 = vmatpush.bf16.msra.mxu0 %v214
    %695 = vmatpush.bf16.msra.mxu0 %v210
    %696 = vmatpush.bf16.msra.mxu0 %v206
    %697 = vmatpush.bf16.msra.mxu0 %v202
    %698 = vmatmul.bf16.gmra.mxu0 %v656
    %v699 = vpop.f32.mrf.mxu0
    %v700 = vadd.f32 %v662, %v699
    %v701 = vpop.f32.mrf.mxu0
    %702 = vdwg.mxu0
    %703 = vmatpush.bf16.msra.mxu0 %v231
    %704 = vmatpush.bf16.msra.mxu0 %v227
    %705 = vmatpush.bf16.msra.mxu0 %v223
    %706 = vmatpush.bf16.msra.mxu0 %v219
    %707 = vmatpush.bf16.msra.mxu0 %v215
    %708 = vmatpush.bf16.msra.mxu0 %v211
    %709 = vmatpush.bf16.msra.mxu0 %v207
    %710 = vmatpush.bf16.msra.mxu0 %v203
    %711 = vmatmul.bf16.gmra.mxu0 %v656
    %v712 = vpop.f32.mrf.mxu0
    %v713 = vadd.f32 %v663, %v712
    %v714 = vpop.f32.mrf.mxu0
    %715 = vdwg.mxu0
    %v716 = vadd.f32 %v674, %v317
    %v717 = vadd.f32 %v687, %v318
    %v718 = vadd.f32 %v700, %v319
    %v719 = vadd.f32 %v713, %v320
    %v720 = vmul.f32 %v716, 0.5
    %v721 = vtanh.pop %v720
    %v722 = vmul.f32 %v721, 0.5
    %v723 = vadd.f32 %v722, 0.5
    %v724 = vmul.f32 %v717, 0.5
    %v725 = vtanh.pop %v724
    %v726 = vmul.f32 %v725, 0.5
    %v727 = vadd.f32 %v726, 0.5
    %v728 = vtanh.pop %v718
    %v729 = vmul.f32 %v719, 0.5
    %v730 = vtanh.pop %v729
    %v731 = vmul.f32 %v730, 0.5
    %v732 = vadd.f32 %v731, 0.5
    %v733 = vmul.f32 %v727, %v655
    %v734 = vmul.f32 %v723, %v728
    %v735 = vadd.f32 %v733, %v734
    %v736 = vtanh.pop %v735
    %v737 = vmul.f32 %v732, %v736
    %s738 = sadd.s32 %s94, 4
    %v739 = vstv %s738
    %vm740 = vcmp.lt.s32.totalorder %v739, %v60
    %v741 = vsel %vm740, 1, 0
    %742 = vset.pattern.permute.xlu0 0
    %743 = vperm.xlu0 %742, %v741
    %v744 = vpop.permute.xlu0 %743
    %vm745 = vcmp.eq.s32.totalorder %v744, 1
    %v746 = vsel %vm745, %v737, %v654
    %747 = vst [vmem:[#allocation2] sm:$0xff] %v746
    %v748 = vsel %vm745, %v735, %v655
    %749 = vst [vmem:[#allocation3] sm:$0xff] %v748
    %v750 = vsel %vm745, %v737, 0.0
    %751 = vst [vmem:[#allocation9 + $0x20] sm:$0xff] %v750
    %v752 = vld [vmem:[#allocation2] sm:$0xff]
    %v753 = vld [vmem:[#allocation3] sm:$0xff]
    %v754 = vpack.c.bf16 %v752, %v752
    %s755 = scalar_lea.vmem [#allocation4], 80
    %v756 = vld [vmem:[%s755] sm:$0xff]
    %v757 = vld [vmem:[%s755 + $0x8] sm:$0xff]
    %v758 = vunpack.c.l.bf16 %v756
    %v759 = vunpack.c.h.bf16 %v756
    %v760 = vunpack.c.l.bf16 %v757
    %v761 = vunpack.c.h.bf16 %v757
    %762 = vmatpush.bf16.msra.mxu0 %v228
    %763 = vmatpush.bf16.msra.mxu0 %v224
    %764 = vmatpush.bf16.msra.mxu0 %v220
    %765 = vmatpush.bf16.msra.mxu0 %v216
    %766 = vmatpush.bf16.msra.mxu0 %v212
    %767 = vmatpush.bf16.msra.mxu0 %v208
    %768 = vmatpush.bf16.msra.mxu0 %v204
    %769 = vmatpush.bf16.msra.mxu0 %v200
    %770 = vmatmul.bf16.gmra.mxu0 %v754
    %v771 = vpop.f32.mrf.mxu0
    %v772 = vadd.f32 %v758, %v771
    %v773 = vpop.f32.mrf.mxu0
    %774 = vdwg.mxu0
    %775 = vmatpush.bf16.msra.mxu0 %v229
    %776 = vmatpush.bf16.msra.mxu0 %v225
    %777 = vmatpush.bf16.msra.mxu0 %v221
    %778 = vmatpush.bf16.msra.mxu0 %v217
    %779 = vmatpush.bf16.msra.mxu0 %v213
    %780 = vmatpush.bf16.msra.mxu0 %v209
    %781 = vmatpush.bf16.msra.mxu0 %v205
    %782 = vmatpush.bf16.msra.mxu0 %v201
    %783 = vmatmul.bf16.gmra.mxu0 %v754
    %v784 = vpop.f32.mrf.mxu0
    %v785 = vadd.f32 %v759, %v784
    %v786 = vpop.f32.mrf.mxu0
    %787 = vdwg.mxu0
    %788 = vmatpush.bf16.msra.mxu0 %v230
    %789 = vmatpush.bf16.msra.mxu0 %v226
    %790 = vmatpush.bf16.msra.mxu0 %v222
    %791 = vmatpush.bf16.msra.mxu0 %v218
    %792 = vmatpush.bf16.msra.mxu0 %v214
    %793 = vmatpush.bf16.msra.mxu0 %v210
    %794 = vmatpush.bf16.msra.mxu0 %v206
    %795 = vmatpush.bf16.msra.mxu0 %v202
    %796 = vmatmul.bf16.gmra.mxu0 %v754
    %v797 = vpop.f32.mrf.mxu0
    %v798 = vadd.f32 %v760, %v797
    %v799 = vpop.f32.mrf.mxu0
    %800 = vdwg.mxu0
    %801 = vmatpush.bf16.msra.mxu0 %v231
    %802 = vmatpush.bf16.msra.mxu0 %v227
    %803 = vmatpush.bf16.msra.mxu0 %v223
    %804 = vmatpush.bf16.msra.mxu0 %v219
    %805 = vmatpush.bf16.msra.mxu0 %v215
    %806 = vmatpush.bf16.msra.mxu0 %v211
    %807 = vmatpush.bf16.msra.mxu0 %v207
    %808 = vmatpush.bf16.msra.mxu0 %v203
    %809 = vmatmul.bf16.gmra.mxu0 %v754
    %v810 = vpop.f32.mrf.mxu0
    %v811 = vadd.f32 %v761, %v810
    %v812 = vpop.f32.mrf.mxu0
    %813 = vdwg.mxu0
    %v814 = vadd.f32 %v772, %v317
    %v815 = vadd.f32 %v785, %v318
    %v816 = vadd.f32 %v798, %v319
    %v817 = vadd.f32 %v811, %v320
    %v818 = vmul.f32 %v814, 0.5
    %v819 = vtanh.pop %v818
    %v820 = vmul.f32 %v819, 0.5
    %v821 = vadd.f32 %v820, 0.5
    %v822 = vmul.f32 %v815, 0.5
    %v823 = vtanh.pop %v822
    %v824 = vmul.f32 %v823, 0.5
    %v825 = vadd.f32 %v824, 0.5
    %v826 = vtanh.pop %v816
    %v827 = vmul.f32 %v817, 0.5
    %v828 = vtanh.pop %v827
    %v829 = vmul.f32 %v828, 0.5
    %v830 = vadd.f32 %v829, 0.5
    %v831 = vmul.f32 %v825, %v753
    %v832 = vmul.f32 %v821, %v826
    %v833 = vadd.f32 %v831, %v832
    %v834 = vtanh.pop %v833
    %v835 = vmul.f32 %v830, %v834
    %s836 = sadd.s32 %s94, 5
    %v837 = vstv %s836
    %vm838 = vcmp.lt.s32.totalorder %v837, %v60
    %v839 = vsel %vm838, 1, 0
    %840 = vset.pattern.permute.xlu0 0
    %841 = vperm.xlu0 %840, %v839
    %v842 = vpop.permute.xlu0 %841
    %vm843 = vcmp.eq.s32.totalorder %v842, 1
    %v844 = vsel %vm843, %v835, %v752
    %845 = vst [vmem:[#allocation2] sm:$0xff] %v844
    %v846 = vsel %vm843, %v833, %v753
    %847 = vst [vmem:[#allocation3] sm:$0xff] %v846
    %v848 = vsel %vm843, %v835, 0.0
    %849 = vst [vmem:[#allocation9 + $0x28] sm:$0xff] %v848
    %v850 = vld [vmem:[#allocation2] sm:$0xff]
    %v851 = vld [vmem:[#allocation3] sm:$0xff]
    %v852 = vpack.c.bf16 %v850, %v850
    %s853 = scalar_lea.vmem [#allocation4], 96
    %v854 = vld [vmem:[%s853] sm:$0xff]
    %v855 = vld [vmem:[%s853 + $0x8] sm:$0xff]
    %v856 = vunpack.c.l.bf16 %v854
    %v857 = vunpack.c.h.bf16 %v854
    %v858 = vunpack.c.l.bf16 %v855
    %v859 = vunpack.c.h.bf16 %v855
    %860 = vmatpush.bf16.msra.mxu0 %v228
    %861 = vmatpush.bf16.msra.mxu0 %v224
    %862 = vmatpush.bf16.msra.mxu0 %v220
    %863 = vmatpush.bf16.msra.mxu0 %v216
    %864 = vmatpush.bf16.msra.mxu0 %v212
    %865 = vmatpush.bf16.msra.mxu0 %v208
    %866 = vmatpush.bf16.msra.mxu0 %v204
    %867 = vmatpush.bf16.msra.mxu0 %v200
    %868 = vmatmul.bf16.gmra.mxu0 %v852
    %v869 = vpop.f32.mrf.mxu0
    %v870 = vadd.f32 %v856, %v869
    %v871 = vpop.f32.mrf.mxu0
    %872 = vdwg.mxu0
    %873 = vmatpush.bf16.msra.mxu0 %v229
    %874 = vmatpush.bf16.msra.mxu0 %v225
    %875 = vmatpush.bf16.msra.mxu0 %v221
    %876 = vmatpush.bf16.msra.mxu0 %v217
    %877 = vmatpush.bf16.msra.mxu0 %v213
    %878 = vmatpush.bf16.msra.mxu0 %v209
    %879 = vmatpush.bf16.msra.mxu0 %v205
    %880 = vmatpush.bf16.msra.mxu0 %v201
    %881 = vmatmul.bf16.gmra.mxu0 %v852
    %v882 = vpop.f32.mrf.mxu0
    %v883 = vadd.f32 %v857, %v882
    %v884 = vpop.f32.mrf.mxu0
    %885 = vdwg.mxu0
    %886 = vmatpush.bf16.msra.mxu0 %v230
    %887 = vmatpush.bf16.msra.mxu0 %v226
    %888 = vmatpush.bf16.msra.mxu0 %v222
    %889 = vmatpush.bf16.msra.mxu0 %v218
    %890 = vmatpush.bf16.msra.mxu0 %v214
    %891 = vmatpush.bf16.msra.mxu0 %v210
    %892 = vmatpush.bf16.msra.mxu0 %v206
    %893 = vmatpush.bf16.msra.mxu0 %v202
    %894 = vmatmul.bf16.gmra.mxu0 %v852
    %v895 = vpop.f32.mrf.mxu0
    %v896 = vadd.f32 %v858, %v895
    %v897 = vpop.f32.mrf.mxu0
    %898 = vdwg.mxu0
    %899 = vmatpush.bf16.msra.mxu0 %v231
    %900 = vmatpush.bf16.msra.mxu0 %v227
    %901 = vmatpush.bf16.msra.mxu0 %v223
    %902 = vmatpush.bf16.msra.mxu0 %v219
    %903 = vmatpush.bf16.msra.mxu0 %v215
    %904 = vmatpush.bf16.msra.mxu0 %v211
    %905 = vmatpush.bf16.msra.mxu0 %v207
    %906 = vmatpush.bf16.msra.mxu0 %v203
    %907 = vmatmul.bf16.gmra.mxu0 %v852
    %v908 = vpop.f32.mrf.mxu0
    %v909 = vadd.f32 %v859, %v908
    %v910 = vpop.f32.mrf.mxu0
    %911 = vdwg.mxu0
    %v912 = vadd.f32 %v870, %v317
    %v913 = vadd.f32 %v883, %v318
    %v914 = vadd.f32 %v896, %v319
    %v915 = vadd.f32 %v909, %v320
    %v916 = vmul.f32 %v912, 0.5
    %v917 = vtanh.pop %v916
    %v918 = vmul.f32 %v917, 0.5
    %v919 = vadd.f32 %v918, 0.5
    %v920 = vmul.f32 %v913, 0.5
    %v921 = vtanh.pop %v920
    %v922 = vmul.f32 %v921, 0.5
    %v923 = vadd.f32 %v922, 0.5
    %v924 = vtanh.pop %v914
    %v925 = vmul.f32 %v915, 0.5
    %v926 = vtanh.pop %v925
    %v927 = vmul.f32 %v926, 0.5
    %v928 = vadd.f32 %v927, 0.5
    %v929 = vmul.f32 %v923, %v851
    %v930 = vmul.f32 %v919, %v924
    %v931 = vadd.f32 %v929, %v930
    %v932 = vtanh.pop %v931
    %v933 = vmul.f32 %v928, %v932
    %s934 = sadd.s32 %s94, 6
    %v935 = vstv %s934
    %vm936 = vcmp.lt.s32.totalorder %v935, %v60
    %v937 = vsel %vm936, 1, 0
    %938 = vset.pattern.permute.xlu0 0
    %939 = vperm.xlu0 %938, %v937
    %v940 = vpop.permute.xlu0 %939
    %vm941 = vcmp.eq.s32.totalorder %v940, 1
    %v942 = vsel %vm941, %v933, %v850
    %943 = vst [vmem:[#allocation2] sm:$0xff] %v942
    %v944 = vsel %vm941, %v931, %v851
    %945 = vst [vmem:[#allocation3] sm:$0xff] %v944
    %v946 = vsel %vm941, %v933, 0.0
    %947 = vst [vmem:[#allocation9 + $0x30] sm:$0xff] %v946
    %v948 = vld [vmem:[#allocation2] sm:$0xff]
    %v949 = vld [vmem:[#allocation3] sm:$0xff]
    %v950 = vpack.c.bf16 %v948, %v948
    %s951 = scalar_lea.vmem [#allocation4], 112
    %v952 = vld [vmem:[%s951] sm:$0xff]
    %v953 = vld [vmem:[%s951 + $0x8] sm:$0xff]
    %v954 = vunpack.c.l.bf16 %v952
    %v955 = vunpack.c.h.bf16 %v952
    %v956 = vunpack.c.l.bf16 %v953
    %v957 = vunpack.c.h.bf16 %v953
    %958 = vmatpush.bf16.msra.mxu0 %v228
    %959 = vmatpush.bf16.msra.mxu0 %v224
    %960 = vmatpush.bf16.msra.mxu0 %v220
    %961 = vmatpush.bf16.msra.mxu0 %v216
    %962 = vmatpush.bf16.msra.mxu0 %v212
    %963 = vmatpush.bf16.msra.mxu0 %v208
    %964 = vmatpush.bf16.msra.mxu0 %v204
    %965 = vmatpush.bf16.msra.mxu0 %v200
    %966 = vmatmul.bf16.gmra.mxu0 %v950
    %v967 = vpop.f32.mrf.mxu0
    %v968 = vadd.f32 %v954, %v967
    %v969 = vpop.f32.mrf.mxu0
    %970 = vdwg.mxu0
    %971 = vmatpush.bf16.msra.mxu0 %v229
    %972 = vmatpush.bf16.msra.mxu0 %v225
    %973 = vmatpush.bf16.msra.mxu0 %v221
    %974 = vmatpush.bf16.msra.mxu0 %v217
    %975 = vmatpush.bf16.msra.mxu0 %v213
    %976 = vmatpush.bf16.msra.mxu0 %v209
    %977 = vmatpush.bf16.msra.mxu0 %v205
    %978 = vmatpush.bf16.msra.mxu0 %v201
    %979 = vmatmul.bf16.gmra.mxu0 %v950
    %v980 = vpop.f32.mrf.mxu0
    %v981 = vadd.f32 %v955, %v980
    %v982 = vpop.f32.mrf.mxu0
    %983 = vdwg.mxu0
    %984 = vmatpush.bf16.msra.mxu0 %v230
    %985 = vmatpush.bf16.msra.mxu0 %v226
    %986 = vmatpush.bf16.msra.mxu0 %v222
    %987 = vmatpush.bf16.msra.mxu0 %v218
    %988 = vmatpush.bf16.msra.mxu0 %v214
    %989 = vmatpush.bf16.msra.mxu0 %v210
    %990 = vmatpush.bf16.msra.mxu0 %v206
    %991 = vmatpush.bf16.msra.mxu0 %v202
    %992 = vmatmul.bf16.gmra.mxu0 %v950
    %v993 = vpop.f32.mrf.mxu0
    %v994 = vadd.f32 %v956, %v993
    %v995 = vpop.f32.mrf.mxu0
    %996 = vdwg.mxu0
    %997 = vmatpush.bf16.msra.mxu0 %v231
    %998 = vmatpush.bf16.msra.mxu0 %v227
    %999 = vmatpush.bf16.msra.mxu0 %v223
    %1000 = vmatpush.bf16.msra.mxu0 %v219
    %1001 = vmatpush.bf16.msra.mxu0 %v215
    %1002 = vmatpush.bf16.msra.mxu0 %v211
    %1003 = vmatpush.bf16.msra.mxu0 %v207
    %1004 = vmatpush.bf16.msra.mxu0 %v203
    %1005 = vmatmul.bf16.gmra.mxu0 %v950
    %v1006 = vpop.f32.mrf.mxu0
    %v1007 = vadd.f32 %v957, %v1006
    %v1008 = vpop.f32.mrf.mxu0
    %1009 = vdwg.mxu0
    %v1010 = vadd.f32 %v968, %v317
    %v1011 = vadd.f32 %v981, %v318
    %v1012 = vadd.f32 %v994, %v319
    %v1013 = vadd.f32 %v1007, %v320
    %v1014 = vmul.f32 %v1010, 0.5
    %v1015 = vtanh.pop %v1014
    %v1016 = vmul.f32 %v1015, 0.5
    %v1017 = vadd.f32 %v1016, 0.5
    %v1018 = vmul.f32 %v1011, 0.5
    %v1019 = vtanh.pop %v1018
    %v1020 = vmul.f32 %v1019, 0.5
    %v1021 = vadd.f32 %v1020, 0.5
    %v1022 = vtanh.pop %v1012
    %v1023 = vmul.f32 %v1013, 0.5
    %v1024 = vtanh.pop %v1023
    %v1025 = vmul.f32 %v1024, 0.5
    %v1026 = vadd.f32 %v1025, 0.5
    %v1027 = vmul.f32 %v1021, %v949
    %v1028 = vmul.f32 %v1017, %v1022
    %v1029 = vadd.f32 %v1027, %v1028
    %v1030 = vtanh.pop %v1029
    %v1031 = vmul.f32 %v1026, %v1030
    %s1032 = sadd.s32 %s94, 7
    %v1033 = vstv %s1032
    %vm1034 = vcmp.lt.s32.totalorder %v1033, %v60
    %v1035 = vsel %vm1034, 1, 0
    %1036 = vset.pattern.permute.xlu0 0
    %1037 = vperm.xlu0 %1036, %v1035
    %v1038 = vpop.permute.xlu0 %1037
    %vm1039 = vcmp.eq.s32.totalorder %v1038, 1
    %v1040 = vsel %vm1039, %v1031, %v948
    %1041 = vst [vmem:[#allocation2] sm:$0xff] %v1040
    %v1042 = vsel %vm1039, %v1029, %v949
    %1043 = vst [vmem:[#allocation3] sm:$0xff] %v1042
    %v1044 = vsel %vm1039, %v1031, 0.0
    %1045 = vst [vmem:[#allocation9 + $0x38] sm:$0xff] %v1044
    // Predicated region
    $region30: #{tpu_custom_call.1} parent=1 // pred_check
      %p1046 = pneg %p54
    $region31: #{tpu_custom_call.1} parent=1 // pred_check_branch
      %1048 = sbr.rel (%p1046) target = $region33
    $region32: #{tpu_custom_call.1} parent=1 // pred_region
      %v1049 = vld [vmem:[#allocation2] sm:$0xff]
      %1050 = vst [vmem:[#allocation10] sm:$0xff] %v1049
      %v1051 = vld [vmem:[#allocation3] sm:$0xff]
      %1052 = vst [vmem:[#allocation12] sm:$0xff] %v1051
    $region33: #{tpu_custom_call.1} parent=1 // pred_fallthru
      _
    // Predicated region
    $region34: #{tpu_custom_call.1} parent=1 // pred_check
      _
    $region35: #{tpu_custom_call.1} parent=1 // pred_check_branch
      %1054 = sbr.rel (0) target = $region37
    $region36: #{tpu_custom_call.1} parent=1 // pred_region
      %1056 = vsyncadd [#allocation6], 0
      %s1058 = sshll.u32 [#allocation9], 4
      %s1059 = int_to_ptr.vmem [resolvable:$true] %s1058
      %s1060 = sshll.u32 %s4, 4
      %s1061 = int_to_ptr.hbm [resolvable:$true] %s1060
      %1063 = dma.vmem_to_hbm [thread:$0]  %s1059, 1024, %s1061, [#allocation6]
    $region37: #{tpu_custom_call.1} parent=1 // pred_fallthru
      _
    // Predicated region
    $region38: #{tpu_custom_call.1} parent=1 // pred_check
      _
    $region39: #{tpu_custom_call.1} parent=1 // pred_check_branch
      %1065 = sbr.rel (0) target = $region41
    $region40: #{tpu_custom_call.1} parent=1 // pred_region
      %1067 = vsyncadd [#allocation11], 0
      %s1069 = sshll.u32 [#allocation10], 4
      %s1070 = int_to_ptr.vmem [resolvable:$true] %s1069
      %s1071 = sshll.u32 %s5, 4
      %s1072 = int_to_ptr.hbm [resolvable:$true] %s1071
      %1074 = dma.vmem_to_hbm [thread:$0]  %s1070, 128, %s1072, [#allocation11]
    $region41: #{tpu_custom_call.1} parent=1 // pred_fallthru
      _
    // Predicated region
    $region42: #{tpu_custom_call.1} parent=1 // pred_check
      _
    $region43: #{tpu_custom_call.1} parent=1 // pred_check_branch
      %1076 = sbr.rel (0) target = $region45
    $region44: #{tpu_custom_call.1} parent=1 // pred_region
      %1078 = vsyncadd [#allocation11], 0
      %s1080 = sshll.u32 [#allocation12], 4
      %s1081 = int_to_ptr.vmem [resolvable:$true] %s1080
      %s1082 = sshll.u32 %s6, 4
      %s1083 = int_to_ptr.hbm [resolvable:$true] %s1082
      %1085 = dma.vmem_to_hbm [thread:$0]  %s1081, 128, %s1083, [#allocation11]
    $region45: #{tpu_custom_call.1} parent=1 // pred_fallthru
      _
    // Predicated region
    $region46: #{tpu_custom_call.1} parent=1 // pred_check
      _
    $region47: #{tpu_custom_call.1} parent=1 // pred_check_branch
      %1087 = sbr.rel (0) target = $region49
    $region48: #{tpu_custom_call.1} parent=1 // pred_region
      %1089 = dma.done [#allocation6], 1024
    $region49: #{tpu_custom_call.1} parent=1 // pred_fallthru
      _
    // Predicated region
    $region50: #{tpu_custom_call.1} parent=1 // pred_check
      _
    $region51: #{tpu_custom_call.1} parent=1 // pred_check_branch
      %1091 = sbr.rel (0) target = $region53
    $region52: #{tpu_custom_call.1} parent=1 // pred_region
      %1093 = dma.done [#allocation11], 128
    $region53: #{tpu_custom_call.1} parent=1 // pred_fallthru
      _
    // Predicated region
    $region54: #{tpu_custom_call.1} parent=1 // pred_check
      _
    $region55: #{tpu_custom_call.1} parent=1 // pred_check_branch
      %1095 = sbr.rel (0) target = $region57
    $region56: #{tpu_custom_call.1} parent=1 // pred_region
      %1097 = dma.done [#allocation11], 128
    $region57: #{tpu_custom_call.1} parent=1 // pred_fallthru
      _
    %1098 = vsyncpa [#allocation5], 1
    %1099 = vsyncpa [#allocation8], 1
    %1100 = vsyncpa [#allocation6], 1
    %1101 = vsyncpa [#allocation11], 1

</llo_original>
